<compile_context>
chip_gen: v7x
topology: tpu7x:2x2x1
jax: 0.10.0
libtpu: 0.0.40
codegen_flags: <defaults>
</compile_context>

<pallas_src>
import functools
import math

import jax
import jax.numpy as jnp
from jax.experimental import pallas as pl
from jax.experimental.pallas import tpu as pltpu


def _conv_image(x_img, w_ref, *, KH, KW, Wpad, Ho, Wo, Cout):
    """Convolution of one padded image, channels-major.

    x_img: (Cin, slab_len) bf16 value -- padded image, (h, w) flattened along lanes.
    w_ref: (KH*KW, Cout, Cin) bf16 ref -- per-tap weight matrices (pre-transposed).
    Returns (Cout, Ho*Wo) f32 -- valid output columns only (lane-dense).
    """
    rows = Ho * Wpad
    acc = jnp.zeros((Cout, rows), jnp.float32)
    for kh in range(KH):
        for kw in range(KW):
            off = kh * Wpad + kw
            # bf16 x bf16 -> f32 on the MXU over the full (aligned) slab; the shifted
            # window is then a static lane-offset slice of the f32 result.
            full = jnp.dot(w_ref[kh * KW + kw], x_img,
                           preferred_element_type=jnp.float32)       # (Cout, slab_len)
            acc = acc + full[:, off:off + rows]
    # Drop the KW-1 wrap-around columns of every output row -> lane-dense valid block.
    # TODO(synk): fold the KH*KW taps into one K=KH*KW*Cin contraction for large Cin.
    return jnp.concatenate(
        [acc[:, h * Wpad:h * Wpad + Wo] for h in range(Ho)], axis=1)  # (Cout, Ho*Wo)


def _fused_kernel(x_ref, w_ref, gamma_ref, beta_ref, o_ref, *,
                  N, KH, KW, Wpad, Ho, Wo, Cout, eps, slope):
    """Whole problem VMEM-resident: conv + batch stats + BN + LeakyReLU in one call."""
    count = float(N * Ho * Wo)
    convs = []
    s = jnp.zeros((Cout, 1), jnp.float32)
    ss = jnp.zeros((Cout, 1), jnp.float32)
    for n in range(N):                                    # N is small on this path
        c = _conv_image(x_ref[n], w_ref, KH=KH, KW=KW, Wpad=Wpad,
                        Ho=Ho, Wo=Wo, Cout=Cout)
        convs.append(c)
        s = s + jnp.sum(c, axis=1, keepdims=True)
        ss = ss + jnp.sum(c * c, axis=1, keepdims=True)

    # Training-mode BatchNorm (biased variance), all f32.
    # NOTE: E[x^2]-E[x]^2 with a clamp; acceptable for activation-scale values.
    mean = s / count
    var = jnp.maximum(ss / count - mean * mean, 0.0)
    scale = gamma_ref[...] * jax.lax.rsqrt(var + eps)     # (Cout, 1)
    shift = beta_ref[...] - mean * scale                  # (Cout, 1)

    for n in range(N):
        y = convs[n] * scale + shift
        o_ref[n] = jnp.where(y >= 0.0, y, slope * y)      # LeakyReLU(0.1)


def _conv_stats_kernel(x_ref, w_ref, conv_ref, stats_ref, *,
                       KH, KW, Wpad, Ho, Wo, Cout):
    """Streaming pass 1 -- one image per grid step.

    x_ref:     (1, Cin, slab_len) bf16
    w_ref:     (KH*KW, Cout, Cin) bf16
    conv_ref:  (1, Cout, Ho*Wo)   bf16  lane-dense conv intermediate
    stats_ref: (1, Cout, 2)       f32   per-image [sum, sum-of-squares]
    """
    c = _conv_image(x_ref[0], w_ref, KH=KH, KW=KW, Wpad=Wpad, Ho=Ho, Wo=Wo, Cout=Cout)
    stats_ref[0, :, 0:1] = jnp.sum(c, axis=1, keepdims=True)
    stats_ref[0, :, 1:2] = jnp.sum(c * c, axis=1, keepdims=True)
    # bf16 intermediate halves the HBM round trip of the conv activation.
    # TODO(synk): on v5e, recompute the conv in pass 2 instead of storing it at all.
    conv_ref[0] = c.astype(conv_ref.dtype)


def _bn_lrelu_kernel(c_ref, scale_ref, shift_ref, o_ref, *, slope):
    """Streaming pass 2: y = conv*scale + shift ; LeakyReLU.  Lane-dense blocks."""
    y = c_ref[...].astype(jnp.float32) * scale_ref[...] + shift_ref[...]
    o_ref[...] = jnp.where(y >= 0.0, y, slope * y)


def _pick_row_block(total_rows, lane_len, budget_bytes=8 * 1024 * 1024):
    """Largest multiple-of-8 divisor of total_rows whose double-buffered bf16-in /
    f32-out blocks fit the budget (pass 2 is HBM-bound: big blocks -> roofline)."""
    cap = max(8, budget_bytes // max(1, lane_len * 12))   # ~(2+4) B/elem x 2 buffers
    best = 0
    r = 8
    limit = min(total_rows, cap)
    while r <= limit:
        if total_rows % r == 0:
            best = r
        r += 8
    return best if best > 0 else total_rows


@functools.partial(
    jax.jit,
    static_argnames=("stride", "padding", "eps", "slope", "force_streaming"))
def cnn_block_forward(x_nchw, weight, gamma, beta, *, stride=1, padding=1,
                      eps=1e-5, slope=0.1, force_streaming=False):
    """CNNBlock forward: LeakyReLU(BatchNorm2d(Conv2d(x, bias=False))).

    x_nchw: (N, Cin, H, W) f32; weight: (Cout, Cin, KH, KW) f32; gamma/beta: (Cout,).
    Returns (N, Cout, Ho, Wo) f32 in NCHW.
    """
    N, Cin, H, W = x_nchw.shape
    Cout, Cin_w, KH, KW = weight.shape
    assert Cin_w == Cin
    # TODO(synk): only stride=1 is implemented (this CNNBlock config: k=3, s=1, p=1);
    # BatchNorm running statistics (eval mode) are not updated -- training stats only.
    assert stride == 1, "stride != 1 not implemented"

    Hpad, Wpad = H + 2 * padding, W + 2 * padding
    Ho, Wo = Hpad - KH + 1, Wpad - KW + 1
    rows = Ho * Wpad
    slab_len = Hpad * Wpad + KW - 1        # shifted windows read up to this index - 1
    count = float(N * Ho * Wo)

    # ---- glue (cheap, no halo duplication, no layout transpose) -------------------
    xpad = jnp.pad(x_nchw.astype(jnp.bfloat16),
                   ((0, 0), (0, 0), (padding, padding), (padding, padding)))
    x_slab = xpad.reshape(N, Cin, Hpad * Wpad)
    x_slab = jnp.pad(x_slab, ((0, 0), (0, 0), (0, slab_len - Hpad * Wpad)))

    # weight (Cout, Cin, KH, KW) -> (KH*KW, Cout, Cin) bf16, fed straight to the MXU.
    wmat = jnp.transpose(weight, (2, 3, 0, 1)).reshape(KH * KW, Cout, Cin)
    wmat = wmat.astype(jnp.bfloat16)

    gamma_col = gamma.astype(jnp.float32).reshape(Cout, 1)
    beta_col = beta.astype(jnp.float32).reshape(Cout, 1)

    # ---- fused path: whole problem VMEM-resident, one un-gridded call -------------
    fused_bytes = (N * Cin * slab_len * 2 + KH * KW * Cout * Cin * 2
                   + 2 * N * Cout * Ho * Wo * 4 + Cout * max(slab_len, rows) * 4)
    if (not force_streaming) and N <= 64 and fused_bytes <= 8 * 1024 * 1024:
        out = pl.pallas_call(
            functools.partial(_fused_kernel, N=N, KH=KH, KW=KW, Wpad=Wpad, Ho=Ho,
                              Wo=Wo, Cout=Cout, eps=eps, slope=slope),
            out_shape=jax.ShapeDtypeStruct((N, Cout, Ho * Wo), jnp.float32),
            compiler_params=pltpu.CompilerParams(vmem_limit_bytes=32 * 1024 * 1024),
        )(x_slab, wmat, gamma_col, beta_col)
        return out.reshape(N, Cout, Ho, Wo)               # free reshape -> NCHW

    # ---- streaming path ------------------------------------------------------------
    # pass 1: per-image conv (bf16 MXU) + BN partial sums; "parallel" grid over N
    # shards across v7x's two TensorCores whenever N >= 2.
    conv_bf16, stats = pl.pallas_call(
        functools.partial(_conv_stats_kernel, KH=KH, KW=KW, Wpad=Wpad, Ho=Ho,
                          Wo=Wo, Cout=Cout),
        grid=(N,),
        out_shape=(
            jax.ShapeDtypeStruct((N, Cout, Ho * Wo), jnp.bfloat16),
            jax.ShapeDtypeStruct((N, Cout, 2), jnp.float32),
        ),
        in_specs=[
            pl.BlockSpec((1, Cin, slab_len), lambda n: (n, 0, 0)),
            pl.BlockSpec((KH * KW, Cout, Cin), lambda n: (0, 0, 0)),
        ],
        out_specs=(
            pl.BlockSpec((1, Cout, Ho * Wo), lambda n: (n, 0, 0)),
            pl.BlockSpec((1, Cout, 2), lambda n: (n, 0, 0)),
        ),
        compiler_params=pltpu.CompilerParams(
            dimension_semantics=("parallel",),
            vmem_limit_bytes=32 * 1024 * 1024),
    )(x_slab, wmat)
    # TODO(synk): for very large feature maps a per-image slab no longer fits VMEM;
    # row-tile with an in-kernel halo DMA (pl.ANY + pltpu.make_async_copy) in that case.

    # tiny cross-image combine (plain JAX): batch mean / biased variance -> scale/shift
    s = jnp.sum(stats[:, :, 0], axis=0)
    ss = jnp.sum(stats[:, :, 1], axis=0)
    mean = s / count
    var = jnp.maximum(ss / count - mean * mean, 0.0)
    inv_std = jax.lax.rsqrt(var + jnp.float32(eps))
    scale = gamma.astype(jnp.float32) * inv_std
    shift = beta.astype(jnp.float32) - mean * scale
    scale_rows = jnp.tile(scale, N).reshape(N * Cout, 1)   # per (n, c) row of pass 2
    shift_rows = jnp.tile(shift, N).reshape(N * Cout, 1)

    # pass 2: BN affine + LeakyReLU over large lane-dense (RB, Ho*Wo) blocks.
    total_rows = N * Cout
    lane_len = Ho * Wo
    RB = _pick_row_block(total_rows, lane_len)
    conv_rows = conv_bf16.reshape(total_rows, lane_len)    # free (row-major) reshape

    out_rows = pl.pallas_call(
        functools.partial(_bn_lrelu_kernel, slope=slope),
        grid=(total_rows // RB,),
        out_shape=jax.ShapeDtypeStruct((total_rows, lane_len), jnp.float32),
        in_specs=[
            pl.BlockSpec((RB, lane_len), lambda r: (r, 0)),
            pl.BlockSpec((RB, 1), lambda r: (r, 0)),
            pl.BlockSpec((RB, 1), lambda r: (r, 0)),
        ],
        out_specs=pl.BlockSpec((RB, lane_len), lambda r: (r, 0)),
        compiler_params=pltpu.CompilerParams(
            dimension_semantics=("parallel",),
            vmem_limit_bytes=32 * 1024 * 1024),
    )(conv_rows, scale_rows, shift_rows)

    return out_rows.reshape(N, Cout, Ho, Wo)               # free reshape -> NCHW


if __name__ == "__main__":
    # CNNBlock(in_channels=4, out_channels=8, kernel_size=3, stride=1, padding=1)
    N, Cin, H, W = 2, 4, 16, 16
    Cout, KH, KW = 8, 3, 3

    key = jax.random.PRNGKey(0)
    kx, kw_, kg, kb = jax.random.split(key, 4)

    x = jax.random.normal(kx, (N, Cin, H, W), dtype=jnp.float32)
    fan_in = Cin * KH * KW
    weight = jax.random.normal(kw_, (Cout, Cin, KH, KW), dtype=jnp.float32) / math.sqrt(fan_in)
    gamma = 1.0 + 0.1 * jax.random.normal(kg, (Cout,), dtype=jnp.float32)
    beta = 0.1 * jax.random.normal(kb, (Cout,), dtype=jnp.float32)

    # Primary (fused, single-call) path and the streaming two-pass path.
    y_fused = jax.block_until_ready(cnn_block_forward(x, weight, gamma, beta))
    y_stream = jax.block_until_ready(
        cnn_block_forward(x, weight, gamma, beta, force_streaming=True))
    assert y_fused.shape == (N, Cout, H, W), y_fused.shape
    assert y_stream.shape == (N, Cout, H, W), y_stream.shape

    # Pure-JAX reference with the same bf16 input/weight rounding (sanity check).
    xb = x.astype(jnp.bfloat16).astype(jnp.float32)
    wb = weight.astype(jnp.bfloat16).astype(jnp.float32)
    conv = jax.lax.conv_general_dilated(
        xb, wb, window_strides=(1, 1), padding=((1, 1), (1, 1)),
        dimension_numbers=("NCHW", "OIHW", "NCHW"),
        precision=jax.lax.Precision.HIGHEST)
    mean = conv.mean(axis=(0, 2, 3), keepdims=True)
    var = ((conv - mean) ** 2).mean(axis=(0, 2, 3), keepdims=True)
    ref = (conv - mean) * jax.lax.rsqrt(var + 1e-5)
    ref = ref * gamma.reshape(1, -1, 1, 1) + beta.reshape(1, -1, 1, 1)
    ref = jnp.where(ref >= 0.0, ref, 0.1 * ref)

    assert float(jnp.max(jnp.abs(y_fused - ref))) < 5e-2
    assert float(jnp.max(jnp.abs(y_stream - ref))) < 5e-2

    print("KERNEL_OK")
</pallas_src>

<mosaic_0001>
module attributes {stable_mosaic.version = 11 : i64} {
  func.func @_fused_kernel(%arg0: memref<2x4x326xbf16, #tpu.memory_space<vmem>>, %arg1: memref<9x8x4xbf16, #tpu.memory_space<vmem>>, %arg2: memref<8x1xf32, #tpu.memory_space<vmem>>, %arg3: memref<8x1xf32, #tpu.memory_space<vmem>>, %arg4: memref<2x8x256xf32, #tpu.memory_space<vmem>>) attributes {dimension_semantics = [], scalar_prefetch = 0 : i64, scratch_operands = 0 : i64, tpu.core_type = #tpu.core_type<tc>} {
    %cst = arith.constant 0.000000e+00 : f32
    %0 = vector.broadcast %cst : f32 to vector<8x1xf32>
    %cst_0 = arith.constant 0.000000e+00 : f32
    %1 = vector.broadcast %cst_0 : f32 to vector<8x1xf32>
    %c0 = arith.constant 0 : index
    %c0_1 = arith.constant 0 : index
    %c0_2 = arith.constant 0 : index
    %2 = vector.load %arg0[%c0, %c0_1, %c0_2] : memref<2x4x326xbf16, #tpu.memory_space<vmem>>, vector<1x4x326xbf16>
    %3 = vector.shape_cast %2 : vector<1x4x326xbf16> to vector<4x326xbf16>
    %cst_3 = arith.constant 0.000000e+00 : f32
    %4 = vector.broadcast %cst_3 : f32 to vector<8x288xf32>
    %c0_4 = arith.constant 0 : index
    %c0_5 = arith.constant 0 : index
    %c0_6 = arith.constant 0 : index
    %5 = vector.load %arg1[%c0_4, %c0_5, %c0_6] : memref<9x8x4xbf16, #tpu.memory_space<vmem>>, vector<1x8x4xbf16>
    %6 = vector.shape_cast %5 : vector<1x8x4xbf16> to vector<8x4xbf16>
    %cst_7 = arith.constant dense<0.000000e+00> : vector<8x326xf32>
    %7 = tpu.matmul %6, %3, %cst_7 {dimension_numbers = #tpu.dot_dimension_numbers<[1], [0], [0], [1], [0, 0, 1, 1], [], []>} : vector<8x4xbf16>, vector<4x326xbf16>, vector<8x326xf32> -> vector<8x326xf32>
    %8 = vector.extract_strided_slice %7 {offsets = [0, 0], sizes = [8, 288], strides = [1, 1]} : vector<8x326xf32> to vector<8x288xf32>
    %9 = arith.addf %4, %8 : vector<8x288xf32>
    %c1 = arith.constant 1 : index
    %c0_8 = arith.constant 0 : index
    %c0_9 = arith.constant 0 : index
    %10 = vector.load %arg1[%c1, %c0_8, %c0_9] : memref<9x8x4xbf16, #tpu.memory_space<vmem>>, vector<1x8x4xbf16>
    %11 = vector.shape_cast %10 : vector<1x8x4xbf16> to vector<8x4xbf16>
    %cst_10 = arith.constant dense<0.000000e+00> : vector<8x326xf32>
    %12 = tpu.matmul %11, %3, %cst_10 {dimension_numbers = #tpu.dot_dimension_numbers<[1], [0], [0], [1], [0, 0, 1, 1], [], []>} : vector<8x4xbf16>, vector<4x326xbf16>, vector<8x326xf32> -> vector<8x326xf32>
    %13 = vector.extract_strided_slice %12 {offsets = [0, 1], sizes = [8, 288], strides = [1, 1]} : vector<8x326xf32> to vector<8x288xf32>
    %14 = arith.addf %9, %13 : vector<8x288xf32>
    %c2 = arith.constant 2 : index
    %c0_11 = arith.constant 0 : index
    %c0_12 = arith.constant 0 : index
    %15 = vector.load %arg1[%c2, %c0_11, %c0_12] : memref<9x8x4xbf16, #tpu.memory_space<vmem>>, vector<1x8x4xbf16>
    %16 = vector.shape_cast %15 : vector<1x8x4xbf16> to vector<8x4xbf16>
    %cst_13 = arith.constant dense<0.000000e+00> : vector<8x326xf32>
    %17 = tpu.matmul %16, %3, %cst_13 {dimension_numbers = #tpu.dot_dimension_numbers<[1], [0], [0], [1], [0, 0, 1, 1], [], []>} : vector<8x4xbf16>, vector<4x326xbf16>, vector<8x326xf32> -> vector<8x326xf32>
    %18 = vector.extract_strided_slice %17 {offsets = [0, 2], sizes = [8, 288], strides = [1, 1]} : vector<8x326xf32> to vector<8x288xf32>
    %19 = arith.addf %14, %18 : vector<8x288xf32>
    %c3 = arith.constant 3 : index
    %c0_14 = arith.constant 0 : index
    %c0_15 = arith.constant 0 : index
    %20 = vector.load %arg1[%c3, %c0_14, %c0_15] : memref<9x8x4xbf16, #tpu.memory_space<vmem>>, vector<1x8x4xbf16>
    %21 = vector.shape_cast %20 : vector<1x8x4xbf16> to vector<8x4xbf16>
    %cst_16 = arith.constant dense<0.000000e+00> : vector<8x326xf32>
    %22 = tpu.matmul %21, %3, %cst_16 {dimension_numbers = #tpu.dot_dimension_numbers<[1], [0], [0], [1], [0, 0, 1, 1], [], []>} : vector<8x4xbf16>, vector<4x326xbf16>, vector<8x326xf32> -> vector<8x326xf32>
    %23 = vector.extract_strided_slice %22 {offsets = [0, 18], sizes = [8, 288], strides = [1, 1]} : vector<8x326xf32> to vector<8x288xf32>
    %24 = arith.addf %19, %23 : vector<8x288xf32>
    %c4 = arith.constant 4 : index
    %c0_17 = arith.constant 0 : index
    %c0_18 = arith.constant 0 : index
    %25 = vector.load %arg1[%c4, %c0_17, %c0_18] : memref<9x8x4xbf16, #tpu.memory_space<vmem>>, vector<1x8x4xbf16>
    %26 = vector.shape_cast %25 : vector<1x8x4xbf16> to vector<8x4xbf16>
    %cst_19 = arith.constant dense<0.000000e+00> : vector<8x326xf32>
    %27 = tpu.matmul %26, %3, %cst_19 {dimension_numbers = #tpu.dot_dimension_numbers<[1], [0], [0], [1], [0, 0, 1, 1], [], []>} : vector<8x4xbf16>, vector<4x326xbf16>, vector<8x326xf32> -> vector<8x326xf32>
    %28 = vector.extract_strided_slice %27 {offsets = [0, 19], sizes = [8, 288], strides = [1, 1]} : vector<8x326xf32> to vector<8x288xf32>
    %29 = arith.addf %24, %28 : vector<8x288xf32>
    %c5 = arith.constant 5 : index
    %c0_20 = arith.constant 0 : index
    %c0_21 = arith.constant 0 : index
    %30 = vector.load %arg1[%c5, %c0_20, %c0_21] : memref<9x8x4xbf16, #tpu.memory_space<vmem>>, vector<1x8x4xbf16>
    %31 = vector.shape_cast %30 : vector<1x8x4xbf16> to vector<8x4xbf16>
    %cst_22 = arith.constant dense<0.000000e+00> : vector<8x326xf32>
    %32 = tpu.matmul %31, %3, %cst_22 {dimension_numbers = #tpu.dot_dimension_numbers<[1], [0], [0], [1], [0, 0, 1, 1], [], []>} : vector<8x4xbf16>, vector<4x326xbf16>, vector<8x326xf32> -> vector<8x326xf32>
    %33 = vector.extract_strided_slice %32 {offsets = [0, 20], sizes = [8, 288], strides = [1, 1]} : vector<8x326xf32> to vector<8x288xf32>
    %34 = arith.addf %29, %33 : vector<8x288xf32>
    %c6 = arith.constant 6 : index
    %c0_23 = arith.constant 0 : index
    %c0_24 = arith.constant 0 : index
    %35 = vector.load %arg1[%c6, %c0_23, %c0_24] : memref<9x8x4xbf16, #tpu.memory_space<vmem>>, vector<1x8x4xbf16>
    %36 = vector.shape_cast %35 : vector<1x8x4xbf16> to vector<8x4xbf16>
    %cst_25 = arith.constant dense<0.000000e+00> : vector<8x326xf32>
    %37 = tpu.matmul %36, %3, %cst_25 {dimension_numbers = #tpu.dot_dimension_numbers<[1], [0], [0], [1], [0, 0, 1, 1], [], []>} : vector<8x4xbf16>, vector<4x326xbf16>, vector<8x326xf32> -> vector<8x326xf32>
    %38 = vector.extract_strided_slice %37 {offsets = [0, 36], sizes = [8, 288], strides = [1, 1]} : vector<8x326xf32> to vector<8x288xf32>
    %39 = arith.addf %34, %38 : vector<8x288xf32>
    %c7 = arith.constant 7 : index
    %c0_26 = arith.constant 0 : index
    %c0_27 = arith.constant 0 : index
    %40 = vector.load %arg1[%c7, %c0_26, %c0_27] : memref<9x8x4xbf16, #tpu.memory_space<vmem>>, vector<1x8x4xbf16>
    %41 = vector.shape_cast %40 : vector<1x8x4xbf16> to vector<8x4xbf16>
    %cst_28 = arith.constant dense<0.000000e+00> : vector<8x326xf32>
    %42 = tpu.matmul %41, %3, %cst_28 {dimension_numbers = #tpu.dot_dimension_numbers<[1], [0], [0], [1], [0, 0, 1, 1], [], []>} : vector<8x4xbf16>, vector<4x326xbf16>, vector<8x326xf32> -> vector<8x326xf32>
    %43 = vector.extract_strided_slice %42 {offsets = [0, 37], sizes = [8, 288], strides = [1, 1]} : vector<8x326xf32> to vector<8x288xf32>
    %44 = arith.addf %39, %43 : vector<8x288xf32>
    %c8 = arith.constant 8 : index
    %c0_29 = arith.constant 0 : index
    %c0_30 = arith.constant 0 : index
    %45 = vector.load %arg1[%c8, %c0_29, %c0_30] : memref<9x8x4xbf16, #tpu.memory_space<vmem>>, vector<1x8x4xbf16>
    %46 = vector.shape_cast %45 : vector<1x8x4xbf16> to vector<8x4xbf16>
    %cst_31 = arith.constant dense<0.000000e+00> : vector<8x326xf32>
    %47 = tpu.matmul %46, %3, %cst_31 {dimension_numbers = #tpu.dot_dimension_numbers<[1], [0], [0], [1], [0, 0, 1, 1], [], []>} : vector<8x4xbf16>, vector<4x326xbf16>, vector<8x326xf32> -> vector<8x326xf32>
    %48 = vector.extract_strided_slice %47 {offsets = [0, 38], sizes = [8, 288], strides = [1, 1]} : vector<8x326xf32> to vector<8x288xf32>
    %49 = arith.addf %44, %48 : vector<8x288xf32>
    %50 = vector.extract_strided_slice %49 {offsets = [0, 0], sizes = [8, 16], strides = [1, 1]} : vector<8x288xf32> to vector<8x16xf32>
    %51 = vector.extract_strided_slice %49 {offsets = [0, 18], sizes = [8, 16], strides = [1, 1]} : vector<8x288xf32> to vector<8x16xf32>
    %52 = vector.extract_strided_slice %49 {offsets = [0, 36], sizes = [8, 16], strides = [1, 1]} : vector<8x288xf32> to vector<8x16xf32>
    %53 = vector.extract_strided_slice %49 {offsets = [0, 54], sizes = [8, 16], strides = [1, 1]} : vector<8x288xf32> to vector<8x16xf32>
    %54 = vector.extract_strided_slice %49 {offsets = [0, 72], sizes = [8, 16], strides = [1, 1]} : vector<8x288xf32> to vector<8x16xf32>
    %55 = vector.extract_strided_slice %49 {offsets = [0, 90], sizes = [8, 16], strides = [1, 1]} : vector<8x288xf32> to vector<8x16xf32>
    %56 = vector.extract_strided_slice %49 {offsets = [0, 108], sizes = [8, 16], strides = [1, 1]} : vector<8x288xf32> to vector<8x16xf32>
    %57 = vector.extract_strided_slice %49 {offsets = [0, 126], sizes = [8, 16], strides = [1, 1]} : vector<8x288xf32> to vector<8x16xf32>
    %58 = vector.extract_strided_slice %49 {offsets = [0, 144], sizes = [8, 16], strides = [1, 1]} : vector<8x288xf32> to vector<8x16xf32>
    %59 = vector.extract_strided_slice %49 {offsets = [0, 162], sizes = [8, 16], strides = [1, 1]} : vector<8x288xf32> to vector<8x16xf32>
    %60 = vector.extract_strided_slice %49 {offsets = [0, 180], sizes = [8, 16], strides = [1, 1]} : vector<8x288xf32> to vector<8x16xf32>
    %61 = vector.extract_strided_slice %49 {offsets = [0, 198], sizes = [8, 16], strides = [1, 1]} : vector<8x288xf32> to vector<8x16xf32>
    %62 = vector.extract_strided_slice %49 {offsets = [0, 216], sizes = [8, 16], strides = [1, 1]} : vector<8x288xf32> to vector<8x16xf32>
    %63 = vector.extract_strided_slice %49 {offsets = [0, 234], sizes = [8, 16], strides = [1, 1]} : vector<8x288xf32> to vector<8x16xf32>
    %64 = vector.extract_strided_slice %49 {offsets = [0, 252], sizes = [8, 16], strides = [1, 1]} : vector<8x288xf32> to vector<8x16xf32>
    %65 = vector.extract_strided_slice %49 {offsets = [0, 270], sizes = [8, 16], strides = [1, 1]} : vector<8x288xf32> to vector<8x16xf32>
    %66 = tpu.concatenate %50, %51, %52, %53, %54, %55, %56, %57, %58, %59, %60, %61, %62, %63, %64, %65 in 1 : vector<8x16xf32>, vector<8x16xf32>, vector<8x16xf32>, vector<8x16xf32>, vector<8x16xf32>, vector<8x16xf32>, vector<8x16xf32>, vector<8x16xf32>, vector<8x16xf32>, vector<8x16xf32>, vector<8x16xf32>, vector<8x16xf32>, vector<8x16xf32>, vector<8x16xf32>, vector<8x16xf32>, vector<8x16xf32> -> vector<8x256xf32>
    %cst_32 = arith.constant dense<0.000000e+00> : vector<8xf32>
    %67 = vector.multi_reduction <add>, %66, %cst_32 [1] : vector<8x256xf32> to vector<8xf32>
    %68 = vector.shape_cast %67 : vector<8xf32> to vector<8x1xf32>
    %69 = arith.addf %0, %68 : vector<8x1xf32>
    %70 = arith.mulf %66, %66 : vector<8x256xf32>
    %cst_33 = arith.constant dense<0.000000e+00> : vector<8xf32>
    %71 = vector.multi_reduction <add>, %70, %cst_33 [1] : vector<8x256xf32> to vector<8xf32>
    %72 = vector.shape_cast %71 : vector<8xf32> to vector<8x1xf32>
    %73 = arith.addf %1, %72 : vector<8x1xf32>
    %c1_34 = arith.constant 1 : index
    %c0_35 = arith.constant 0 : index
    %c0_36 = arith.constant 0 : index
    %74 = vector.load %arg0[%c1_34, %c0_35, %c0_36] : memref<2x4x326xbf16, #tpu.memory_space<vmem>>, vector<1x4x326xbf16>
    %75 = vector.shape_cast %74 : vector<1x4x326xbf16> to vector<4x326xbf16>
    %cst_37 = arith.constant 0.000000e+00 : f32
    %76 = vector.broadcast %cst_37 : f32 to vector<8x288xf32>
    %c0_38 = arith.constant 0 : index
    %c0_39 = arith.constant 0 : index
    %c0_40 = arith.constant 0 : index
    %77 = vector.load %arg1[%c0_38, %c0_39, %c0_40] : memref<9x8x4xbf16, #tpu.memory_space<vmem>>, vector<1x8x4xbf16>
    %78 = vector.shape_cast %77 : vector<1x8x4xbf16> to vector<8x4xbf16>
    %cst_41 = arith.constant dense<0.000000e+00> : vector<8x326xf32>
    %79 = tpu.matmul %78, %75, %cst_41 {dimension_numbers = #tpu.dot_dimension_numbers<[1], [0], [0], [1], [0, 0, 1, 1], [], []>} : vector<8x4xbf16>, vector<4x326xbf16>, vector<8x326xf32> -> vector<8x326xf32>
    %80 = vector.extract_strided_slice %79 {offsets = [0, 0], sizes = [8, 288], strides = [1, 1]} : vector<8x326xf32> to vector<8x288xf32>
    %81 = arith.addf %76, %80 : vector<8x288xf32>
    %c1_42 = arith.constant 1 : index
    %c0_43 = arith.constant 0 : index
    %c0_44 = arith.constant 0 : index
    %82 = vector.load %arg1[%c1_42, %c0_43, %c0_44] : memref<9x8x4xbf16, #tpu.memory_space<vmem>>, vector<1x8x4xbf16>
    %83 = vector.shape_cast %82 : vector<1x8x4xbf16> to vector<8x4xbf16>
    %cst_45 = arith.constant dense<0.000000e+00> : vector<8x326xf32>
    %84 = tpu.matmul %83, %75, %cst_45 {dimension_numbers = #tpu.dot_dimension_numbers<[1], [0], [0], [1], [0, 0, 1, 1], [], []>} : vector<8x4xbf16>, vector<4x326xbf16>, vector<8x326xf32> -> vector<8x326xf32>
    %85 = vector.extract_strided_slice %84 {offsets = [0, 1], sizes = [8, 288], strides = [1, 1]} : vector<8x326xf32> to vector<8x288xf32>
    %86 = arith.addf %81, %85 : vector<8x288xf32>
    %c2_46 = arith.constant 2 : index
    %c0_47 = arith.constant 0 : index
    %c0_48 = arith.constant 0 : index
    %87 = vector.load %arg1[%c2_46, %c0_47, %c0_48] : memref<9x8x4xbf16, #tpu.memory_space<vmem>>, vector<1x8x4xbf16>
    %88 = vector.shape_cast %87 : vector<1x8x4xbf16> to vector<8x4xbf16>
    %cst_49 = arith.constant dense<0.000000e+00> : vector<8x326xf32>
    %89 = tpu.matmul %88, %75, %cst_49 {dimension_numbers = #tpu.dot_dimension_numbers<[1], [0], [0], [1], [0, 0, 1, 1], [], []>} : vector<8x4xbf16>, vector<4x326xbf16>, vector<8x326xf32> -> vector<8x326xf32>
    %90 = vector.extract_strided_slice %89 {offsets = [0, 2], sizes = [8, 288], strides = [1, 1]} : vector<8x326xf32> to vector<8x288xf32>
    %91 = arith.addf %86, %90 : vector<8x288xf32>
    %c3_50 = arith.constant 3 : index
    %c0_51 = arith.constant 0 : index
    %c0_52 = arith.constant 0 : index
    %92 = vector.load %arg1[%c3_50, %c0_51, %c0_52] : memref<9x8x4xbf16, #tpu.memory_space<vmem>>, vector<1x8x4xbf16>
    %93 = vector.shape_cast %92 : vector<1x8x4xbf16> to vector<8x4xbf16>
    %cst_53 = arith.constant dense<0.000000e+00> : vector<8x326xf32>
    %94 = tpu.matmul %93, %75, %cst_53 {dimension_numbers = #tpu.dot_dimension_numbers<[1], [0], [0], [1], [0, 0, 1, 1], [], []>} : vector<8x4xbf16>, vector<4x326xbf16>, vector<8x326xf32> -> vector<8x326xf32>
    %95 = vector.extract_strided_slice %94 {offsets = [0, 18], sizes = [8, 288], strides = [1, 1]} : vector<8x326xf32> to vector<8x288xf32>
    %96 = arith.addf %91, %95 : vector<8x288xf32>
    %c4_54 = arith.constant 4 : index
    %c0_55 = arith.constant 0 : index
    %c0_56 = arith.constant 0 : index
    %97 = vector.load %arg1[%c4_54, %c0_55, %c0_56] : memref<9x8x4xbf16, #tpu.memory_space<vmem>>, vector<1x8x4xbf16>
    %98 = vector.shape_cast %97 : vector<1x8x4xbf16> to vector<8x4xbf16>
    %cst_57 = arith.constant dense<0.000000e+00> : vector<8x326xf32>
    %99 = tpu.matmul %98, %75, %cst_57 {dimension_numbers = #tpu.dot_dimension_numbers<[1], [0], [0], [1], [0, 0, 1, 1], [], []>} : vector<8x4xbf16>, vector<4x326xbf16>, vector<8x326xf32> -> vector<8x326xf32>
    %100 = vector.extract_strided_slice %99 {offsets = [0, 19], sizes = [8, 288], strides = [1, 1]} : vector<8x326xf32> to vector<8x288xf32>
    %101 = arith.addf %96, %100 : vector<8x288xf32>
    %c5_58 = arith.constant 5 : index
    %c0_59 = arith.constant 0 : index
    %c0_60 = arith.constant 0 : index
    %102 = vector.load %arg1[%c5_58, %c0_59, %c0_60] : memref<9x8x4xbf16, #tpu.memory_space<vmem>>, vector<1x8x4xbf16>
    %103 = vector.shape_cast %102 : vector<1x8x4xbf16> to vector<8x4xbf16>
    %cst_61 = arith.constant dense<0.000000e+00> : vector<8x326xf32>
    %104 = tpu.matmul %103, %75, %cst_61 {dimension_numbers = #tpu.dot_dimension_numbers<[1], [0], [0], [1], [0, 0, 1, 1], [], []>} : vector<8x4xbf16>, vector<4x326xbf16>, vector<8x326xf32> -> vector<8x326xf32>
    %105 = vector.extract_strided_slice %104 {offsets = [0, 20], sizes = [8, 288], strides = [1, 1]} : vector<8x326xf32> to vector<8x288xf32>
    %106 = arith.addf %101, %105 : vector<8x288xf32>
    %c6_62 = arith.constant 6 : index
    %c0_63 = arith.constant 0 : index
    %c0_64 = arith.constant 0 : index
    %107 = vector.load %arg1[%c6_62, %c0_63, %c0_64] : memref<9x8x4xbf16, #tpu.memory_space<vmem>>, vector<1x8x4xbf16>
    %108 = vector.shape_cast %107 : vector<1x8x4xbf16> to vector<8x4xbf16>
    %cst_65 = arith.constant dense<0.000000e+00> : vector<8x326xf32>
    %109 = tpu.matmul %108, %75, %cst_65 {dimension_numbers = #tpu.dot_dimension_numbers<[1], [0], [0], [1], [0, 0, 1, 1], [], []>} : vector<8x4xbf16>, vector<4x326xbf16>, vector<8x326xf32> -> vector<8x326xf32>
    %110 = vector.extract_strided_slice %109 {offsets = [0, 36], sizes = [8, 288], strides = [1, 1]} : vector<8x326xf32> to vector<8x288xf32>
    %111 = arith.addf %106, %110 : vector<8x288xf32>
    %c7_66 = arith.constant 7 : index
    %c0_67 = arith.constant 0 : index
    %c0_68 = arith.constant 0 : index
    %112 = vector.load %arg1[%c7_66, %c0_67, %c0_68] : memref<9x8x4xbf16, #tpu.memory_space<vmem>>, vector<1x8x4xbf16>
    %113 = vector.shape_cast %112 : vector<1x8x4xbf16> to vector<8x4xbf16>
    %cst_69 = arith.constant dense<0.000000e+00> : vector<8x326xf32>
    %114 = tpu.matmul %113, %75, %cst_69 {dimension_numbers = #tpu.dot_dimension_numbers<[1], [0], [0], [1], [0, 0, 1, 1], [], []>} : vector<8x4xbf16>, vector<4x326xbf16>, vector<8x326xf32> -> vector<8x326xf32>
    %115 = vector.extract_strided_slice %114 {offsets = [0, 37], sizes = [8, 288], strides = [1, 1]} : vector<8x326xf32> to vector<8x288xf32>
    %116 = arith.addf %111, %115 : vector<8x288xf32>
    %c8_70 = arith.constant 8 : index
    %c0_71 = arith.constant 0 : index
    %c0_72 = arith.constant 0 : index
    %117 = vector.load %arg1[%c8_70, %c0_71, %c0_72] : memref<9x8x4xbf16, #tpu.memory_space<vmem>>, vector<1x8x4xbf16>
    %118 = vector.shape_cast %117 : vector<1x8x4xbf16> to vector<8x4xbf16>
    %cst_73 = arith.constant dense<0.000000e+00> : vector<8x326xf32>
    %119 = tpu.matmul %118, %75, %cst_73 {dimension_numbers = #tpu.dot_dimension_numbers<[1], [0], [0], [1], [0, 0, 1, 1], [], []>} : vector<8x4xbf16>, vector<4x326xbf16>, vector<8x326xf32> -> vector<8x326xf32>
    %120 = vector.extract_strided_slice %119 {offsets = [0, 38], sizes = [8, 288], strides = [1, 1]} : vector<8x326xf32> to vector<8x288xf32>
    %121 = arith.addf %116, %120 : vector<8x288xf32>
    %122 = vector.extract_strided_slice %121 {offsets = [0, 0], sizes = [8, 16], strides = [1, 1]} : vector<8x288xf32> to vector<8x16xf32>
    %123 = vector.extract_strided_slice %121 {offsets = [0, 18], sizes = [8, 16], strides = [1, 1]} : vector<8x288xf32> to vector<8x16xf32>
    %124 = vector.extract_strided_slice %121 {offsets = [0, 36], sizes = [8, 16], strides = [1, 1]} : vector<8x288xf32> to vector<8x16xf32>
    %125 = vector.extract_strided_slice %121 {offsets = [0, 54], sizes = [8, 16], strides = [1, 1]} : vector<8x288xf32> to vector<8x16xf32>
    %126 = vector.extract_strided_slice %121 {offsets = [0, 72], sizes = [8, 16], strides = [1, 1]} : vector<8x288xf32> to vector<8x16xf32>
    %127 = vector.extract_strided_slice %121 {offsets = [0, 90], sizes = [8, 16], strides = [1, 1]} : vector<8x288xf32> to vector<8x16xf32>
    %128 = vector.extract_strided_slice %121 {offsets = [0, 108], sizes = [8, 16], strides = [1, 1]} : vector<8x288xf32> to vector<8x16xf32>
    %129 = vector.extract_strided_slice %121 {offsets = [0, 126], sizes = [8, 16], strides = [1, 1]} : vector<8x288xf32> to vector<8x16xf32>
    %130 = vector.extract_strided_slice %121 {offsets = [0, 144], sizes = [8, 16], strides = [1, 1]} : vector<8x288xf32> to vector<8x16xf32>
    %131 = vector.extract_strided_slice %121 {offsets = [0, 162], sizes = [8, 16], strides = [1, 1]} : vector<8x288xf32> to vector<8x16xf32>
    %132 = vector.extract_strided_slice %121 {offsets = [0, 180], sizes = [8, 16], strides = [1, 1]} : vector<8x288xf32> to vector<8x16xf32>
    %133 = vector.extract_strided_slice %121 {offsets = [0, 198], sizes = [8, 16], strides = [1, 1]} : vector<8x288xf32> to vector<8x16xf32>
    %134 = vector.extract_strided_slice %121 {offsets = [0, 216], sizes = [8, 16], strides = [1, 1]} : vector<8x288xf32> to vector<8x16xf32>
    %135 = vector.extract_strided_slice %121 {offsets = [0, 234], sizes = [8, 16], strides = [1, 1]} : vector<8x288xf32> to vector<8x16xf32>
    %136 = vector.extract_strided_slice %121 {offsets = [0, 252], sizes = [8, 16], strides = [1, 1]} : vector<8x288xf32> to vector<8x16xf32>
    %137 = vector.extract_strided_slice %121 {offsets = [0, 270], sizes = [8, 16], strides = [1, 1]} : vector<8x288xf32> to vector<8x16xf32>
    %138 = tpu.concatenate %122, %123, %124, %125, %126, %127, %128, %129, %130, %131, %132, %133, %134, %135, %136, %137 in 1 : vector<8x16xf32>, vector<8x16xf32>, vector<8x16xf32>, vector<8x16xf32>, vector<8x16xf32>, vector<8x16xf32>, vector<8x16xf32>, vector<8x16xf32>, vector<8x16xf32>, vector<8x16xf32>, vector<8x16xf32>, vector<8x16xf32>, vector<8x16xf32>, vector<8x16xf32>, vector<8x16xf32>, vector<8x16xf32> -> vector<8x256xf32>
    %cst_74 = arith.constant dense<0.000000e+00> : vector<8xf32>
    %139 = vector.multi_reduction <add>, %138, %cst_74 [1] : vector<8x256xf32> to vector<8xf32>
    %140 = vector.shape_cast %139 : vector<8xf32> to vector<8x1xf32>
    %141 = arith.addf %69, %140 : vector<8x1xf32>
    %142 = arith.mulf %138, %138 : vector<8x256xf32>
    %cst_75 = arith.constant dense<0.000000e+00> : vector<8xf32>
    %143 = vector.multi_reduction <add>, %142, %cst_75 [1] : vector<8x256xf32> to vector<8xf32>
    %144 = vector.shape_cast %143 : vector<8xf32> to vector<8x1xf32>
    %145 = arith.addf %73, %144 : vector<8x1xf32>
    %cst_76 = arith.constant 5.120000e+02 : f32
    %146 = vector.broadcast %cst_76 : f32 to vector<8x1xf32>
    %147 = arith.divf %141, %146 : vector<8x1xf32>
    %cst_77 = arith.constant 5.120000e+02 : f32
    %148 = vector.broadcast %cst_77 : f32 to vector<8x1xf32>
    %149 = arith.divf %145, %148 : vector<8x1xf32>
    %150 = arith.mulf %147, %147 : vector<8x1xf32>
    %151 = arith.subf %149, %150 : vector<8x1xf32>
    %cst_78 = arith.constant 0.000000e+00 : f32
    %152 = vector.broadcast %cst_78 : f32 to vector<8x1xf32>
    %153 = arith.maximumf %151, %152 : vector<8x1xf32>
    %c0_79 = arith.constant 0 : index
    %c0_80 = arith.constant 0 : index
    %154 = vector.load %arg2[%c0_79, %c0_80] : memref<8x1xf32, #tpu.memory_space<vmem>>, vector<8x1xf32>
    %cst_81 = arith.constant 9.99999974E-6 : f32
    %155 = vector.broadcast %cst_81 : f32 to vector<8x1xf32>
    %156 = arith.addf %153, %155 : vector<8x1xf32>
    %157 = math.rsqrt %156 : vector<8x1xf32>
    %158 = arith.mulf %154, %157 : vector<8x1xf32>
    %c0_82 = arith.constant 0 : index
    %c0_83 = arith.constant 0 : index
    %159 = vector.load %arg3[%c0_82, %c0_83] : memref<8x1xf32, #tpu.memory_space<vmem>>, vector<8x1xf32>
    %160 = arith.mulf %147, %158 : vector<8x1xf32>
    %161 = arith.subf %159, %160 : vector<8x1xf32>
    %162 = vector.broadcast %158 : vector<8x1xf32> to vector<8x256xf32>
    %163 = arith.mulf %66, %162 : vector<8x256xf32>
    %164 = vector.broadcast %161 : vector<8x1xf32> to vector<8x256xf32>
    %165 = arith.addf %163, %164 : vector<8x256xf32>
    %cst_84 = arith.constant 0.000000e+00 : f32
    %166 = vector.broadcast %cst_84 : f32 to vector<8x256xf32>
    %167 = arith.cmpf oge, %165, %166 : vector<8x256xf32>
    %cst_85 = arith.constant 1.000000e-01 : f32
    %168 = vector.broadcast %cst_85 : f32 to vector<8x256xf32>
    %169 = arith.mulf %168, %165 : vector<8x256xf32>
    %170 = arith.select %167, %165, %169 : vector<8x256xi1>, vector<8x256xf32>
    %c0_86 = arith.constant 0 : index
    %c0_87 = arith.constant 0 : index
    %c0_88 = arith.constant 0 : index
    %171 = vector.load %arg4[%c0_86, %c0_87, %c0_88] : memref<2x8x256xf32, #tpu.memory_space<vmem>>, vector<1x8x256xf32>
    %172 = vector.shape_cast %171 : vector<1x8x256xf32> to vector<8x256xf32>
    %173 = vector.shape_cast %170 : vector<8x256xf32> to vector<1x8x256xf32>
    tpu.vector_store %arg4[%c0_86, %c0_87, %c0_88], %173 {strides = array<i32>} : memref<2x8x256xf32, #tpu.memory_space<vmem>>, vector<1x8x256xf32>,
    %174 = vector.broadcast %158 : vector<8x1xf32> to vector<8x256xf32>
    %175 = arith.mulf %138, %174 : vector<8x256xf32>
    %176 = vector.broadcast %161 : vector<8x1xf32> to vector<8x256xf32>
    %177 = arith.addf %175, %176 : vector<8x256xf32>
    %cst_89 = arith.constant 0.000000e+00 : f32
    %178 = vector.broadcast %cst_89 : f32 to vector<8x256xf32>
    %179 = arith.cmpf oge, %177, %178 : vector<8x256xf32>
    %cst_90 = arith.constant 1.000000e-01 : f32
    %180 = vector.broadcast %cst_90 : f32 to vector<8x256xf32>
    %181 = arith.mulf %180, %177 : vector<8x256xf32>
    %182 = arith.select %179, %177, %181 : vector<8x256xi1>, vector<8x256xf32>
    %c1_91 = arith.constant 1 : index
    %c0_92 = arith.constant 0 : index
    %c0_93 = arith.constant 0 : index
    %183 = vector.load %arg4[%c1_91, %c0_92, %c0_93] : memref<2x8x256xf32, #tpu.memory_space<vmem>>, vector<1x8x256xf32>
    %184 = vector.shape_cast %183 : vector<1x8x256xf32> to vector<8x256xf32>
    %185 = vector.shape_cast %182 : vector<8x256xf32> to vector<1x8x256xf32>
    tpu.vector_store %arg4[%c1_91, %c0_92, %c0_93], %185 {strides = array<i32>} : memref<2x8x256xf32, #tpu.memory_space<vmem>>, vector<1x8x256xf32>,
    return
  }
}

</mosaic_0001>

<llo_original>
// kernel: cnn_block_forward.1
$region0: #{cnn_block_forward.1}
  #allocation0 [shape = 'u32[]', space=smem, size = 0x4, offset = 0x4, fixed_abs, tag = 'smem constant byte address 0x4 - core index']
  #allocation1 [shape = 'u32[144,128]{1,0:T(1,128)}', space=vmem, size = 0x12000, scoped, tag = 'internal scratch']
  %s0 = inlined_call_operand.vmem [shape: bf16[2,4,326], index: 0, kind: input, shape index: {}]
  %s1 = inlined_call_operand.vmem [shape: bf16[9,8,4], index: 1, kind: input, shape index: {}]
  %s2 = inlined_call_operand.vmem [shape: f32[8,1], index: 2, kind: input, shape index: {}]
  %s3 = inlined_call_operand.vmem [shape: f32[8,1], index: 3, kind: input, shape index: {}]
  %s4 = inlined_call_operand.vmem [shape: f32[2,8,256], index: 4, kind: output, shape index: {}]
  %s5 = sld [smem:[#allocation0]]
  $region26: #{cnn_block_forward.1} parent=0
    _
  %s7 = ssub.s32 1, %s5
  %s8 = scalar_select 0, %s7, %s5
  // Predicated region
  $region2: #{cnn_block_forward.1} parent=0 // pred_check
    _
  $region3: #{cnn_block_forward.1} parent=0 // pred_check_branch
    %10 = sbr.rel (0) target = $region5
  $region4: #{cnn_block_forward.1} parent=0 // pred_region
    _
  $region5: #{cnn_block_forward.1} parent=0 // pred_fallthru
    _
  // Predicated region
  $region6: #{cnn_block_forward.1} parent=0 // pred_check
    _
  $region7: #{cnn_block_forward.1} parent=0 // pred_check_branch
    %12 = sbr.rel (0) target = $region9
  $region8: #{cnn_block_forward.1} parent=0 // pred_region
    _
  $region9: #{cnn_block_forward.1} parent=0 // pred_fallthru
    _
  // Predicated region
  $region10: #{cnn_block_forward.1} parent=0 // pred_check
    _
  $region11: #{cnn_block_forward.1} parent=0 // pred_check_branch
    %14 = sbr.rel (0) target = $region13
  $region12: #{cnn_block_forward.1} parent=0 // pred_region
    _
  $region13: #{cnn_block_forward.1} parent=0 // pred_fallthru
    _
  // Predicated region
  $region14: #{cnn_block_forward.1} parent=0 // pred_check
    _
  $region15: #{cnn_block_forward.1} parent=0 // pred_check_branch
    %16 = sbr.rel (0) target = $region17
  $region16: #{cnn_block_forward.1} parent=0 // pred_region
    _
  $region17: #{cnn_block_forward.1} parent=0 // pred_fallthru
    _
  %v18 = vld [vmem:[%s0] sm:$0x3f]
  %v19 = vld [vmem:[%s1] sm:$0xf]
  %v21 = vcombine.high %v18, %v18
  %v23 = vunpack.c.l.s4 1983009808
  %v24 = vunpack.c.0.s8 %v23
  %v25 = vlaneseq
  %v26 = vshrl.u32 %v25, 7
  %v27 = vsub.s32 %v24, %v26
  %v28 = vrot.slane %v18, %v27
  %v30 = vunpack.c.l.s4 1983009808
  %v31 = vunpack.c.0.s8 %v30
  %v32 = vlaneseq
  %v33 = vshrl.u32 %v32, 7
  %v34 = vsub.s32 %v31, %v33
  %v35 = vrot.slane %v21, %v34
  %v36 = vcombine.high %v28, %v28
  %vm37 = vcmask 31744
  %v39 = vsel %vm37, %v19, 0
  %vm41 = vcmask 1041408
  %v43 = vsel %vm41, %v28, 0
  %v46 = vsel %vm41, %v36, 0
  %v49 = vsel %vm41, %v35, 0
  %51 = vmatprep.subr.bf16.mxu0 %v46
  %52 = vmatpush1.bf16.msra.mxu0 %v43
  %53 = vmatprep.subr.bf16.mxu0 0
  %54 = vmatpush1.bf16.msra.mxu0 0
  %55 = vmatprep.subr.bf16.mxu0 0
  %56 = vmatpush1.bf16.msra.mxu0 0
  %57 = vmatprep.subr.bf16.mxu0 0
  %58 = vmatpush1.bf16.msra.mxu0 0
  %59 = vmatprep.subr.bf16.mxu0 0
  %60 = vmatpush1.bf16.msra.mxu0 0
  %61 = vmatprep.subr.bf16.mxu0 0
  %62 = vmatpush1.bf16.msra.mxu0 0
  %63 = vmatprep.subr.bf16.mxu0 0
  %64 = vmatpush1.bf16.msra.mxu0 0
  %65 = vmatprep.subr.bf16.mxu0 0
  %66 = vmatpush1.bf16.msra.mxu0 0
  %67 = vmatprep.subr.bf16.mxu0 0
  %68 = vmatpush1.bf16.msra.mxu0 0
  %69 = vmatprep.subr.bf16.mxu0 0
  %70 = vmatpush1.bf16.msra.mxu0 0
  %71 = vmatprep.subr.bf16.mxu0 0
  %72 = vmatpush1.bf16.msra.mxu0 0
  %73 = vmatprep.subr.bf16.mxu0 0
  %74 = vmatpush1.bf16.msra.mxu0 0
  %75 = vmatprep.subr.bf16.mxu0 0
  %76 = vmatpush1.bf16.msra.mxu0 0
  %77 = vmatprep.subr.bf16.mxu0 0
  %78 = vmatpush1.bf16.msra.mxu0 0
  %79 = vmatprep.subr.bf16.mxu0 0
  %80 = vmatpush1.bf16.msra.mxu0 0
  %81 = vmatprep.subr.bf16.mxu0 0
  %82 = vmatpush1.bf16.msra.mxu0 0
  %83 = vmatprep.mubr.bf16.mxu0 0
  %84 = vmatmul.mubr.bf16.gmra.mrb[0].mxu0 %v39
  %v85 = vpop.f32.mrb[0].mxu0
  %v86 = vadd.f32 0.0, %v85
  %v87 = vpop.f32.mrb[0].mxu0
  %v88 = vadd.f32 0.0, %v87
  %v89 = vpop.f32.mrb[0].mxu0
  %v90 = vpop.f32.mrb[0].mxu0
  %91 = vdwg.mxu0
  %92 = vmatprep.subr.bf16.mxu0 0
  %93 = vmatpush1.bf16.msra.mxu0 %v49
  %94 = vmatprep.subr.bf16.mxu0 0
  %95 = vmatpush1.bf16.msra.mxu0 0
  %96 = vmatprep.subr.bf16.mxu0 0
  %97 = vmatpush1.bf16.msra.mxu0 0
  %98 = vmatprep.subr.bf16.mxu0 0
  %99 = vmatpush1.bf16.msra.mxu0 0
  %100 = vmatprep.subr.bf16.mxu0 0
  %101 = vmatpush1.bf16.msra.mxu0 0
  %102 = vmatprep.subr.bf16.mxu0 0
  %103 = vmatpush1.bf16.msra.mxu0 0
  %104 = vmatprep.subr.bf16.mxu0 0
  %105 = vmatpush1.bf16.msra.mxu0 0
  %106 = vmatprep.subr.bf16.mxu0 0
  %107 = vmatpush1.bf16.msra.mxu0 0
  %108 = vmatprep.subr.bf16.mxu0 0
  %109 = vmatpush1.bf16.msra.mxu0 0
  %110 = vmatprep.subr.bf16.mxu0 0
  %111 = vmatpush1.bf16.msra.mxu0 0
  %112 = vmatprep.subr.bf16.mxu0 0
  %113 = vmatpush1.bf16.msra.mxu0 0
  %114 = vmatprep.subr.bf16.mxu0 0
  %115 = vmatpush1.bf16.msra.mxu0 0
  %116 = vmatprep.subr.bf16.mxu0 0
  %117 = vmatpush1.bf16.msra.mxu0 0
  %118 = vmatprep.subr.bf16.mxu0 0
  %119 = vmatpush1.bf16.msra.mxu0 0
  %120 = vmatprep.subr.bf16.mxu0 0
  %121 = vmatpush1.bf16.msra.mxu0 0
  %122 = vmatprep.subr.bf16.mxu0 0
  %123 = vmatpush1.bf16.msra.mxu0 0
  %124 = vmatprep.mubr.bf16.mxu0 0
  %125 = vmatmul.mubr.bf16.gmra.mrb[0].mxu0 %v39
  %v126 = vpop.f32.mrb[0].mxu0
  %v127 = vadd.f32 0.0, %v126
  %v128 = vpop.f32.mrb[0].mxu0
  %v129 = vpop.f32.mrb[0].mxu0
  %v130 = vpop.f32.mrb[0].mxu0
  %131 = vdwg.mxu0
  %v132 = vadd.f32 %v86, 0.0
  %v133 = vadd.f32 %v88, 0.0
  %v134 = vadd.f32 %v127, 0.0
  %s135 = scalar_lea.vmem %s1, 4
  %v136 = vld [vmem:[%s135] sm:$0xf]
  %v138 = vsel %vm37, %v136, 0
  %140 = vmatprep.subr.bf16.mxu0 %v46
  %141 = vmatpush1.bf16.msra.mxu0 %v43
  %142 = vmatprep.subr.bf16.mxu0 0
  %143 = vmatpush1.bf16.msra.mxu0 0
  %144 = vmatprep.subr.bf16.mxu0 0
  %145 = vmatpush1.bf16.msra.mxu0 0
  %146 = vmatprep.subr.bf16.mxu0 0
  %147 = vmatpush1.bf16.msra.mxu0 0
  %148 = vmatprep.subr.bf16.mxu0 0
  %149 = vmatpush1.bf16.msra.mxu0 0
  %150 = vmatprep.subr.bf16.mxu0 0
  %151 = vmatpush1.bf16.msra.mxu0 0
  %152 = vmatprep.subr.bf16.mxu0 0
  %153 = vmatpush1.bf16.msra.mxu0 0
  %154 = vmatprep.subr.bf16.mxu0 0
  %155 = vmatpush1.bf16.msra.mxu0 0
  %156 = vmatprep.subr.bf16.mxu0 0
  %157 = vmatpush1.bf16.msra.mxu0 0
  %158 = vmatprep.subr.bf16.mxu0 0
  %159 = vmatpush1.bf16.msra.mxu0 0
  %160 = vmatprep.subr.bf16.mxu0 0
  %161 = vmatpush1.bf16.msra.mxu0 0
  %162 = vmatprep.subr.bf16.mxu0 0
  %163 = vmatpush1.bf16.msra.mxu0 0
  %164 = vmatprep.subr.bf16.mxu0 0
  %165 = vmatpush1.bf16.msra.mxu0 0
  %166 = vmatprep.subr.bf16.mxu0 0
  %167 = vmatpush1.bf16.msra.mxu0 0
  %168 = vmatprep.subr.bf16.mxu0 0
  %169 = vmatpush1.bf16.msra.mxu0 0
  %170 = vmatprep.subr.bf16.mxu0 0
  %171 = vmatpush1.bf16.msra.mxu0 0
  %172 = vmatprep.mubr.bf16.mxu0 0
  %173 = vmatmul.mubr.bf16.gmra.mrb[0].mxu0 %v138
  %v174 = vpop.f32.mrb[0].mxu0
  %v175 = vadd.f32 0.0, %v174
  %v176 = vpop.f32.mrb[0].mxu0
  %v177 = vadd.f32 0.0, %v176
  %v178 = vpop.f32.mrb[0].mxu0
  %v179 = vpop.f32.mrb[0].mxu0
  %180 = vdwg.mxu0
  %181 = vmatprep.subr.bf16.mxu0 0
  %182 = vmatpush1.bf16.msra.mxu0 %v49
  %183 = vmatprep.subr.bf16.mxu0 0
  %184 = vmatpush1.bf16.msra.mxu0 0
  %185 = vmatprep.subr.bf16.mxu0 0
  %186 = vmatpush1.bf16.msra.mxu0 0
  %187 = vmatprep.subr.bf16.mxu0 0
  %188 = vmatpush1.bf16.msra.mxu0 0
  %189 = vmatprep.subr.bf16.mxu0 0
  %190 = vmatpush1.bf16.msra.mxu0 0
  %191 = vmatprep.subr.bf16.mxu0 0
  %192 = vmatpush1.bf16.msra.mxu0 0
  %193 = vmatprep.subr.bf16.mxu0 0
  %194 = vmatpush1.bf16.msra.mxu0 0
  %195 = vmatprep.subr.bf16.mxu0 0
  %196 = vmatpush1.bf16.msra.mxu0 0
  %197 = vmatprep.subr.bf16.mxu0 0
  %198 = vmatpush1.bf16.msra.mxu0 0
  %199 = vmatprep.subr.bf16.mxu0 0
  %200 = vmatpush1.bf16.msra.mxu0 0
  %201 = vmatprep.subr.bf16.mxu0 0
  %202 = vmatpush1.bf16.msra.mxu0 0
  %203 = vmatprep.subr.bf16.mxu0 0
  %204 = vmatpush1.bf16.msra.mxu0 0
  %205 = vmatprep.subr.bf16.mxu0 0
  %206 = vmatpush1.bf16.msra.mxu0 0
  %207 = vmatprep.subr.bf16.mxu0 0
  %208 = vmatpush1.bf16.msra.mxu0 0
  %209 = vmatprep.subr.bf16.mxu0 0
  %210 = vmatpush1.bf16.msra.mxu0 0
  %211 = vmatprep.subr.bf16.mxu0 0
  %212 = vmatpush1.bf16.msra.mxu0 0
  %213 = vmatprep.mubr.bf16.mxu0 0
  %214 = vmatmul.mubr.bf16.gmra.mrb[0].mxu0 %v138
  %v215 = vpop.f32.mrb[0].mxu0
  %v216 = vadd.f32 0.0, %v215
  %v217 = vpop.f32.mrb[0].mxu0
  %v218 = vpop.f32.mrb[0].mxu0
  %v219 = vpop.f32.mrb[0].mxu0
  %220 = vdwg.mxu0
  %224 = vrot.lane.b32.xlu0 %v175, 127
  %v225 = vpop.permute.xlu0 %224
  %226 = vrot.lane.b32.xlu0 %v177, 127
  %v227 = vpop.permute.xlu0 %226
  %228 = vrot.lane.b32.xlu0 %v216, 127
  %v229 = vpop.permute.xlu0 %228
  %vm230 = vcmask 1039360
  %v231 = vsel %vm230, %v225, %v227
  %v232 = vsel %vm230, %v227, %v229
  %v236 = vadd.f32 %v132, %v231
  %v237 = vadd.f32 %v133, %v232
  %v238 = vadd.f32 %v134, %v229
  %s239 = scalar_lea.vmem %s1, 8
  %v240 = vld [vmem:[%s239] sm:$0xf]
  %v242 = vsel %vm37, %v240, 0
  %244 = vmatprep.subr.bf16.mxu0 %v46
  %245 = vmatpush1.bf16.msra.mxu0 %v43
  %246 = vmatprep.subr.bf16.mxu0 0
  %247 = vmatpush1.bf16.msra.mxu0 0
  %248 = vmatprep.subr.bf16.mxu0 0
  %249 = vmatpush1.bf16.msra.mxu0 0
  %250 = vmatprep.subr.bf16.mxu0 0
  %251 = vmatpush1.bf16.msra.mxu0 0
  %252 = vmatprep.subr.bf16.mxu0 0
  %253 = vmatpush1.bf16.msra.mxu0 0
  %254 = vmatprep.subr.bf16.mxu0 0
  %255 = vmatpush1.bf16.msra.mxu0 0
  %256 = vmatprep.subr.bf16.mxu0 0
  %257 = vmatpush1.bf16.msra.mxu0 0
  %258 = vmatprep.subr.bf16.mxu0 0
  %259 = vmatpush1.bf16.msra.mxu0 0
  %260 = vmatprep.subr.bf16.mxu0 0
  %261 = vmatpush1.bf16.msra.mxu0 0
  %262 = vmatprep.subr.bf16.mxu0 0
  %263 = vmatpush1.bf16.msra.mxu0 0
  %264 = vmatprep.subr.bf16.mxu0 0
  %265 = vmatpush1.bf16.msra.mxu0 0
  %266 = vmatprep.subr.bf16.mxu0 0
  %267 = vmatpush1.bf16.msra.mxu0 0
  %268 = vmatprep.subr.bf16.mxu0 0
  %269 = vmatpush1.bf16.msra.mxu0 0
  %270 = vmatprep.subr.bf16.mxu0 0
  %271 = vmatpush1.bf16.msra.mxu0 0
  %272 = vmatprep.subr.bf16.mxu0 0
  %273 = vmatpush1.bf16.msra.mxu0 0
  %274 = vmatprep.subr.bf16.mxu0 0
  %275 = vmatpush1.bf16.msra.mxu0 0
  %276 = vmatprep.mubr.bf16.mxu0 0
  %277 = vmatmul.mubr.bf16.gmra.mrb[0].mxu0 %v242
  %v278 = vpop.f32.mrb[0].mxu0
  %v279 = vadd.f32 0.0, %v278
  %v280 = vpop.f32.mrb[0].mxu0
  %v281 = vadd.f32 0.0, %v280
  %v282 = vpop.f32.mrb[0].mxu0
  %v283 = vpop.f32.mrb[0].mxu0
  %284 = vdwg.mxu0
  %285 = vmatprep.subr.bf16.mxu0 0
  %286 = vmatpush1.bf16.msra.mxu0 %v49
  %287 = vmatprep.subr.bf16.mxu0 0
  %288 = vmatpush1.bf16.msra.mxu0 0
  %289 = vmatprep.subr.bf16.mxu0 0
  %290 = vmatpush1.bf16.msra.mxu0 0
  %291 = vmatprep.subr.bf16.mxu0 0
  %292 = vmatpush1.bf16.msra.mxu0 0
  %293 = vmatprep.subr.bf16.mxu0 0
  %294 = vmatpush1.bf16.msra.mxu0 0
  %295 = vmatprep.subr.bf16.mxu0 0
  %296 = vmatpush1.bf16.msra.mxu0 0
  %297 = vmatprep.subr.bf16.mxu0 0
  %298 = vmatpush1.bf16.msra.mxu0 0
  %299 = vmatprep.subr.bf16.mxu0 0
  %300 = vmatpush1.bf16.msra.mxu0 0
  %301 = vmatprep.subr.bf16.mxu0 0
  %302 = vmatpush1.bf16.msra.mxu0 0
  %303 = vmatprep.subr.bf16.mxu0 0
  %304 = vmatpush1.bf16.msra.mxu0 0
  %305 = vmatprep.subr.bf16.mxu0 0
  %306 = vmatpush1.bf16.msra.mxu0 0
  %307 = vmatprep.subr.bf16.mxu0 0
  %308 = vmatpush1.bf16.msra.mxu0 0
  %309 = vmatprep.subr.bf16.mxu0 0
  %310 = vmatpush1.bf16.msra.mxu0 0
  %311 = vmatprep.subr.bf16.mxu0 0
  %312 = vmatpush1.bf16.msra.mxu0 0
  %313 = vmatprep.subr.bf16.mxu0 0
  %314 = vmatpush1.bf16.msra.mxu0 0
  %315 = vmatprep.subr.bf16.mxu0 0
  %316 = vmatpush1.bf16.msra.mxu0 0
  %317 = vmatprep.mubr.bf16.mxu0 0
  %318 = vmatmul.mubr.bf16.gmra.mrb[0].mxu0 %v242
  %v319 = vpop.f32.mrb[0].mxu0
  %v320 = vadd.f32 0.0, %v319
  %v321 = vpop.f32.mrb[0].mxu0
  %v322 = vpop.f32.mrb[0].mxu0
  %v323 = vpop.f32.mrb[0].mxu0
  %324 = vdwg.mxu0
  %328 = vrot.lane.b32.xlu0 %v279, 126
  %v329 = vpop.permute.xlu0 %328
  %330 = vrot.lane.b32.xlu0 %v281, 126
  %v331 = vpop.permute.xlu0 %330
  %332 = vrot.lane.b32.xlu0 %v320, 126
  %v333 = vpop.permute.xlu0 %332
  %vm334 = vcmask 1031168
  %v335 = vsel %vm334, %v329, %v331
  %v336 = vsel %vm334, %v331, %v333
  %v340 = vadd.f32 %v236, %v335
  %v341 = vadd.f32 %v237, %v336
  %v342 = vadd.f32 %v238, %v333
  %s343 = scalar_lea.vmem %s1, 12
  %v344 = vld [vmem:[%s343] sm:$0xf]
  %v346 = vsel %vm37, %v344, 0
  %348 = vmatprep.subr.bf16.mxu0 %v46
  %349 = vmatpush1.bf16.msra.mxu0 %v43
  %350 = vmatprep.subr.bf16.mxu0 0
  %351 = vmatpush1.bf16.msra.mxu0 0
  %352 = vmatprep.subr.bf16.mxu0 0
  %353 = vmatpush1.bf16.msra.mxu0 0
  %354 = vmatprep.subr.bf16.mxu0 0
  %355 = vmatpush1.bf16.msra.mxu0 0
  %356 = vmatprep.subr.bf16.mxu0 0
  %357 = vmatpush1.bf16.msra.mxu0 0
  %358 = vmatprep.subr.bf16.mxu0 0
  %359 = vmatpush1.bf16.msra.mxu0 0
  %360 = vmatprep.subr.bf16.mxu0 0
  %361 = vmatpush1.bf16.msra.mxu0 0
  %362 = vmatprep.subr.bf16.mxu0 0
  %363 = vmatpush1.bf16.msra.mxu0 0
  %364 = vmatprep.subr.bf16.mxu0 0
  %365 = vmatpush1.bf16.msra.mxu0 0
  %366 = vmatprep.subr.bf16.mxu0 0
  %367 = vmatpush1.bf16.msra.mxu0 0
  %368 = vmatprep.subr.bf16.mxu0 0
  %369 = vmatpush1.bf16.msra.mxu0 0
  %370 = vmatprep.subr.bf16.mxu0 0
  %371 = vmatpush1.bf16.msra.mxu0 0
  %372 = vmatprep.subr.bf16.mxu0 0
  %373 = vmatpush1.bf16.msra.mxu0 0
  %374 = vmatprep.subr.bf16.mxu0 0
  %375 = vmatpush1.bf16.msra.mxu0 0
  %376 = vmatprep.subr.bf16.mxu0 0
  %377 = vmatpush1.bf16.msra.mxu0 0
  %378 = vmatprep.subr.bf16.mxu0 0
  %379 = vmatpush1.bf16.msra.mxu0 0
  %380 = vmatprep.mubr.bf16.mxu0 0
  %381 = vmatmul.mubr.bf16.gmra.mrb[0].mxu0 %v346
  %v382 = vpop.f32.mrb[0].mxu0
  %v383 = vadd.f32 0.0, %v382
  %v384 = vpop.f32.mrb[0].mxu0
  %v385 = vadd.f32 0.0, %v384
  %v386 = vpop.f32.mrb[0].mxu0
  %v387 = vpop.f32.mrb[0].mxu0
  %388 = vdwg.mxu0
  %389 = vmatprep.subr.bf16.mxu0 0
  %390 = vmatpush1.bf16.msra.mxu0 %v49
  %391 = vmatprep.subr.bf16.mxu0 0
  %392 = vmatpush1.bf16.msra.mxu0 0
  %393 = vmatprep.subr.bf16.mxu0 0
  %394 = vmatpush1.bf16.msra.mxu0 0
  %395 = vmatprep.subr.bf16.mxu0 0
  %396 = vmatpush1.bf16.msra.mxu0 0
  %397 = vmatprep.subr.bf16.mxu0 0
  %398 = vmatpush1.bf16.msra.mxu0 0
  %399 = vmatprep.subr.bf16.mxu0 0
  %400 = vmatpush1.bf16.msra.mxu0 0
  %401 = vmatprep.subr.bf16.mxu0 0
  %402 = vmatpush1.bf16.msra.mxu0 0
  %403 = vmatprep.subr.bf16.mxu0 0
  %404 = vmatpush1.bf16.msra.mxu0 0
  %405 = vmatprep.subr.bf16.mxu0 0
  %406 = vmatpush1.bf16.msra.mxu0 0
  %407 = vmatprep.subr.bf16.mxu0 0
  %408 = vmatpush1.bf16.msra.mxu0 0
  %409 = vmatprep.subr.bf16.mxu0 0
  %410 = vmatpush1.bf16.msra.mxu0 0
  %411 = vmatprep.subr.bf16.mxu0 0
  %412 = vmatpush1.bf16.msra.mxu0 0
  %413 = vmatprep.subr.bf16.mxu0 0
  %414 = vmatpush1.bf16.msra.mxu0 0
  %415 = vmatprep.subr.bf16.mxu0 0
  %416 = vmatpush1.bf16.msra.mxu0 0
  %417 = vmatprep.subr.bf16.mxu0 0
  %418 = vmatpush1.bf16.msra.mxu0 0
  %419 = vmatprep.subr.bf16.mxu0 0
  %420 = vmatpush1.bf16.msra.mxu0 0
  %421 = vmatprep.mubr.bf16.mxu0 0
  %422 = vmatmul.mubr.bf16.gmra.mrb[0].mxu0 %v346
  %v423 = vpop.f32.mrb[0].mxu0
  %v424 = vadd.f32 0.0, %v423
  %v425 = vpop.f32.mrb[0].mxu0
  %v426 = vpop.f32.mrb[0].mxu0
  %v427 = vpop.f32.mrb[0].mxu0
  %428 = vdwg.mxu0
  %432 = vrot.lane.b32.xlu0 %v383, 110
  %v433 = vpop.permute.xlu0 %432
  %434 = vrot.lane.b32.xlu0 %v385, 110
  %v435 = vpop.permute.xlu0 %434
  %436 = vrot.lane.b32.xlu0 %v424, 110
  %v437 = vpop.permute.xlu0 %436
  %vm438 = vcmask 900096
  %v439 = vsel %vm438, %v433, %v435
  %v440 = vsel %vm438, %v435, %v437
  %v444 = vadd.f32 %v340, %v439
  %v445 = vadd.f32 %v341, %v440
  %v446 = vadd.f32 %v342, %v437
  %s447 = scalar_lea.vmem %s1, 16
  %v448 = vld [vmem:[%s447] sm:$0xf]
  %v450 = vsel %vm37, %v448, 0
  %452 = vmatprep.subr.bf16.mxu0 %v46
  %453 = vmatpush1.bf16.msra.mxu0 %v43
  %454 = vmatprep.subr.bf16.mxu0 0
  %455 = vmatpush1.bf16.msra.mxu0 0
  %456 = vmatprep.subr.bf16.mxu0 0
  %457 = vmatpush1.bf16.msra.mxu0 0
  %458 = vmatprep.subr.bf16.mxu0 0
  %459 = vmatpush1.bf16.msra.mxu0 0
  %460 = vmatprep.subr.bf16.mxu0 0
  %461 = vmatpush1.bf16.msra.mxu0 0
  %462 = vmatprep.subr.bf16.mxu0 0
  %463 = vmatpush1.bf16.msra.mxu0 0
  %464 = vmatprep.subr.bf16.mxu0 0
  %465 = vmatpush1.bf16.msra.mxu0 0
  %466 = vmatprep.subr.bf16.mxu0 0
  %467 = vmatpush1.bf16.msra.mxu0 0
  %468 = vmatprep.subr.bf16.mxu0 0
  %469 = vmatpush1.bf16.msra.mxu0 0
  %470 = vmatprep.subr.bf16.mxu0 0
  %471 = vmatpush1.bf16.msra.mxu0 0
  %472 = vmatprep.subr.bf16.mxu0 0
  %473 = vmatpush1.bf16.msra.mxu0 0
  %474 = vmatprep.subr.bf16.mxu0 0
  %475 = vmatpush1.bf16.msra.mxu0 0
  %476 = vmatprep.subr.bf16.mxu0 0
  %477 = vmatpush1.bf16.msra.mxu0 0
  %478 = vmatprep.subr.bf16.mxu0 0
  %479 = vmatpush1.bf16.msra.mxu0 0
  %480 = vmatprep.subr.bf16.mxu0 0
  %481 = vmatpush1.bf16.msra.mxu0 0
  %482 = vmatprep.subr.bf16.mxu0 0
  %483 = vmatpush1.bf16.msra.mxu0 0
  %484 = vmatprep.mubr.bf16.mxu0 0
  %485 = vmatmul.mubr.bf16.gmra.mrb[0].mxu0 %v450
  %v486 = vpop.f32.mrb[0].mxu0
  %v487 = vadd.f32 0.0, %v486
  %v488 = vpop.f32.mrb[0].mxu0
  %v489 = vadd.f32 0.0, %v488
  %v490 = vpop.f32.mrb[0].mxu0
  %v491 = vpop.f32.mrb[0].mxu0
  %492 = vdwg.mxu0
  %493 = vmatprep.subr.bf16.mxu0 0
  %494 = vmatpush1.bf16.msra.mxu0 %v49
  %495 = vmatprep.subr.bf16.mxu0 0
  %496 = vmatpush1.bf16.msra.mxu0 0
  %497 = vmatprep.subr.bf16.mxu0 0
  %498 = vmatpush1.bf16.msra.mxu0 0
  %499 = vmatprep.subr.bf16.mxu0 0
  %500 = vmatpush1.bf16.msra.mxu0 0
  %501 = vmatprep.subr.bf16.mxu0 0
  %502 = vmatpush1.bf16.msra.mxu0 0
  %503 = vmatprep.subr.bf16.mxu0 0
  %504 = vmatpush1.bf16.msra.mxu0 0
  %505 = vmatprep.subr.bf16.mxu0 0
  %506 = vmatpush1.bf16.msra.mxu0 0
  %507 = vmatprep.subr.bf16.mxu0 0
  %508 = vmatpush1.bf16.msra.mxu0 0
  %509 = vmatprep.subr.bf16.mxu0 0
  %510 = vmatpush1.bf16.msra.mxu0 0
  %511 = vmatprep.subr.bf16.mxu0 0
  %512 = vmatpush1.bf16.msra.mxu0 0
  %513 = vmatprep.subr.bf16.mxu0 0
  %514 = vmatpush1.bf16.msra.mxu0 0
  %515 = vmatprep.subr.bf16.mxu0 0
  %516 = vmatpush1.bf16.msra.mxu0 0
  %517 = vmatprep.subr.bf16.mxu0 0
  %518 = vmatpush1.bf16.msra.mxu0 0
  %519 = vmatprep.subr.bf16.mxu0 0
  %520 = vmatpush1.bf16.msra.mxu0 0
  %521 = vmatprep.subr.bf16.mxu0 0
  %522 = vmatpush1.bf16.msra.mxu0 0
  %523 = vmatprep.subr.bf16.mxu0 0
  %524 = vmatpush1.bf16.msra.mxu0 0
  %525 = vmatprep.mubr.bf16.mxu0 0
  %526 = vmatmul.mubr.bf16.gmra.mrb[0].mxu0 %v450
  %v527 = vpop.f32.mrb[0].mxu0
  %v528 = vadd.f32 0.0, %v527
  %v529 = vpop.f32.mrb[0].mxu0
  %v530 = vpop.f32.mrb[0].mxu0
  %v531 = vpop.f32.mrb[0].mxu0
  %532 = vdwg.mxu0
  %536 = vrot.lane.b32.xlu0 %v487, 109
  %v537 = vpop.permute.xlu0 %536
  %538 = vrot.lane.b32.xlu0 %v489, 109
  %v539 = vpop.permute.xlu0 %538
  %540 = vrot.lane.b32.xlu0 %v528, 109
  %v541 = vpop.permute.xlu0 %540
  %vm542 = vcmask 891904
  %v543 = vsel %vm542, %v537, %v539
  %v544 = vsel %vm542, %v539, %v541
  %v548 = vadd.f32 %v444, %v543
  %v549 = vadd.f32 %v445, %v544
  %v550 = vadd.f32 %v446, %v541
  %s551 = scalar_lea.vmem %s1, 20
  %v552 = vld [vmem:[%s551] sm:$0xf]
  %v554 = vsel %vm37, %v552, 0
  %556 = vmatprep.subr.bf16.mxu0 %v46
  %557 = vmatpush1.bf16.msra.mxu0 %v43
  %558 = vmatprep.subr.bf16.mxu0 0
  %559 = vmatpush1.bf16.msra.mxu0 0
  %560 = vmatprep.subr.bf16.mxu0 0
  %561 = vmatpush1.bf16.msra.mxu0 0
  %562 = vmatprep.subr.bf16.mxu0 0
  %563 = vmatpush1.bf16.msra.mxu0 0
  %564 = vmatprep.subr.bf16.mxu0 0
  %565 = vmatpush1.bf16.msra.mxu0 0
  %566 = vmatprep.subr.bf16.mxu0 0
  %567 = vmatpush1.bf16.msra.mxu0 0
  %568 = vmatprep.subr.bf16.mxu0 0
  %569 = vmatpush1.bf16.msra.mxu0 0
  %570 = vmatprep.subr.bf16.mxu0 0
  %571 = vmatpush1.bf16.msra.mxu0 0
  %572 = vmatprep.subr.bf16.mxu0 0
  %573 = vmatpush1.bf16.msra.mxu0 0
  %574 = vmatprep.subr.bf16.mxu0 0
  %575 = vmatpush1.bf16.msra.mxu0 0
  %576 = vmatprep.subr.bf16.mxu0 0
  %577 = vmatpush1.bf16.msra.mxu0 0
  %578 = vmatprep.subr.bf16.mxu0 0
  %579 = vmatpush1.bf16.msra.mxu0 0
  %580 = vmatprep.subr.bf16.mxu0 0
  %581 = vmatpush1.bf16.msra.mxu0 0
  %582 = vmatprep.subr.bf16.mxu0 0
  %583 = vmatpush1.bf16.msra.mxu0 0
  %584 = vmatprep.subr.bf16.mxu0 0
  %585 = vmatpush1.bf16.msra.mxu0 0
  %586 = vmatprep.subr.bf16.mxu0 0
  %587 = vmatpush1.bf16.msra.mxu0 0
  %588 = vmatprep.mubr.bf16.mxu0 0
  %589 = vmatmul.mubr.bf16.gmra.mrb[0].mxu0 %v554
  %v590 = vpop.f32.mrb[0].mxu0
  %v591 = vadd.f32 0.0, %v590
  %v592 = vpop.f32.mrb[0].mxu0
  %v593 = vadd.f32 0.0, %v592
  %v594 = vpop.f32.mrb[0].mxu0
  %v595 = vpop.f32.mrb[0].mxu0
  %596 = vdwg.mxu0
  %597 = vmatprep.subr.bf16.mxu0 0
  %598 = vmatpush1.bf16.msra.mxu0 %v49
  %599 = vmatprep.subr.bf16.mxu0 0
  %600 = vmatpush1.bf16.msra.mxu0 0
  %601 = vmatprep.subr.bf16.mxu0 0
  %602 = vmatpush1.bf16.msra.mxu0 0
  %603 = vmatprep.subr.bf16.mxu0 0
  %604 = vmatpush1.bf16.msra.mxu0 0
  %605 = vmatprep.subr.bf16.mxu0 0
  %606 = vmatpush1.bf16.msra.mxu0 0
  %607 = vmatprep.subr.bf16.mxu0 0
  %608 = vmatpush1.bf16.msra.mxu0 0
  %609 = vmatprep.subr.bf16.mxu0 0
  %610 = vmatpush1.bf16.msra.mxu0 0
  %611 = vmatprep.subr.bf16.mxu0 0
  %612 = vmatpush1.bf16.msra.mxu0 0
  %613 = vmatprep.subr.bf16.mxu0 0
  %614 = vmatpush1.bf16.msra.mxu0 0
  %615 = vmatprep.subr.bf16.mxu0 0
  %616 = vmatpush1.bf16.msra.mxu0 0
  %617 = vmatprep.subr.bf16.mxu0 0
  %618 = vmatpush1.bf16.msra.mxu0 0
  %619 = vmatprep.subr.bf16.mxu0 0
  %620 = vmatpush1.bf16.msra.mxu0 0
  %621 = vmatprep.subr.bf16.mxu0 0
  %622 = vmatpush1.bf16.msra.mxu0 0
  %623 = vmatprep.subr.bf16.mxu0 0
  %624 = vmatpush1.bf16.msra.mxu0 0
  %625 = vmatprep.subr.bf16.mxu0 0
  %626 = vmatpush1.bf16.msra.mxu0 0
  %627 = vmatprep.subr.bf16.mxu0 0
  %628 = vmatpush1.bf16.msra.mxu0 0
  %629 = vmatprep.mubr.bf16.mxu0 0
  %630 = vmatmul.mubr.bf16.gmra.mrb[0].mxu0 %v554
  %v631 = vpop.f32.mrb[0].mxu0
  %v632 = vadd.f32 0.0, %v631
  %v633 = vpop.f32.mrb[0].mxu0
  %v634 = vpop.f32.mrb[0].mxu0
  %v635 = vpop.f32.mrb[0].mxu0
  %636 = vdwg.mxu0
  %640 = vrot.lane.b32.xlu0 %v591, 108
  %v641 = vpop.permute.xlu0 %640
  %642 = vrot.lane.b32.xlu0 %v593, 108
  %v643 = vpop.permute.xlu0 %642
  %644 = vrot.lane.b32.xlu0 %v632, 108
  %v645 = vpop.permute.xlu0 %644
  %vm646 = vcmask 883712
  %v647 = vsel %vm646, %v641, %v643
  %v648 = vsel %vm646, %v643, %v645
  %v652 = vadd.f32 %v548, %v647
  %v653 = vadd.f32 %v549, %v648
  %v654 = vadd.f32 %v550, %v645
  %s655 = scalar_lea.vmem %s1, 24
  %v656 = vld [vmem:[%s655] sm:$0xf]
  %v658 = vsel %vm37, %v656, 0
  %660 = vmatprep.subr.bf16.mxu0 %v46
  %661 = vmatpush1.bf16.msra.mxu0 %v43
  %662 = vmatprep.subr.bf16.mxu0 0
  %663 = vmatpush1.bf16.msra.mxu0 0
  %664 = vmatprep.subr.bf16.mxu0 0
  %665 = vmatpush1.bf16.msra.mxu0 0
  %666 = vmatprep.subr.bf16.mxu0 0
  %667 = vmatpush1.bf16.msra.mxu0 0
  %668 = vmatprep.subr.bf16.mxu0 0
  %669 = vmatpush1.bf16.msra.mxu0 0
  %670 = vmatprep.subr.bf16.mxu0 0
  %671 = vmatpush1.bf16.msra.mxu0 0
  %672 = vmatprep.subr.bf16.mxu0 0
  %673 = vmatpush1.bf16.msra.mxu0 0
  %674 = vmatprep.subr.bf16.mxu0 0
  %675 = vmatpush1.bf16.msra.mxu0 0
  %676 = vmatprep.subr.bf16.mxu0 0
  %677 = vmatpush1.bf16.msra.mxu0 0
  %678 = vmatprep.subr.bf16.mxu0 0
  %679 = vmatpush1.bf16.msra.mxu0 0
  %680 = vmatprep.subr.bf16.mxu0 0
  %681 = vmatpush1.bf16.msra.mxu0 0
  %682 = vmatprep.subr.bf16.mxu0 0
  %683 = vmatpush1.bf16.msra.mxu0 0
  %684 = vmatprep.subr.bf16.mxu0 0
  %685 = vmatpush1.bf16.msra.mxu0 0
  %686 = vmatprep.subr.bf16.mxu0 0
  %687 = vmatpush1.bf16.msra.mxu0 0
  %688 = vmatprep.subr.bf16.mxu0 0
  %689 = vmatpush1.bf16.msra.mxu0 0
  %690 = vmatprep.subr.bf16.mxu0 0
  %691 = vmatpush1.bf16.msra.mxu0 0
  %692 = vmatprep.mubr.bf16.mxu0 0
  %693 = vmatmul.mubr.bf16.gmra.mrb[0].mxu0 %v658
  %v694 = vpop.f32.mrb[0].mxu0
  %v695 = vadd.f32 0.0, %v694
  %v696 = vpop.f32.mrb[0].mxu0
  %v697 = vadd.f32 0.0, %v696
  %v698 = vpop.f32.mrb[0].mxu0
  %v699 = vpop.f32.mrb[0].mxu0
  %700 = vdwg.mxu0
  %701 = vmatprep.subr.bf16.mxu0 0
  %702 = vmatpush1.bf16.msra.mxu0 %v49
  %703 = vmatprep.subr.bf16.mxu0 0
  %704 = vmatpush1.bf16.msra.mxu0 0
  %705 = vmatprep.subr.bf16.mxu0 0
  %706 = vmatpush1.bf16.msra.mxu0 0
  %707 = vmatprep.subr.bf16.mxu0 0
  %708 = vmatpush1.bf16.msra.mxu0 0
  %709 = vmatprep.subr.bf16.mxu0 0
  %710 = vmatpush1.bf16.msra.mxu0 0
  %711 = vmatprep.subr.bf16.mxu0 0
  %712 = vmatpush1.bf16.msra.mxu0 0
  %713 = vmatprep.subr.bf16.mxu0 0
  %714 = vmatpush1.bf16.msra.mxu0 0
  %715 = vmatprep.subr.bf16.mxu0 0
  %716 = vmatpush1.bf16.msra.mxu0 0
  %717 = vmatprep.subr.bf16.mxu0 0
  %718 = vmatpush1.bf16.msra.mxu0 0
  %719 = vmatprep.subr.bf16.mxu0 0
  %720 = vmatpush1.bf16.msra.mxu0 0
  %721 = vmatprep.subr.bf16.mxu0 0
  %722 = vmatpush1.bf16.msra.mxu0 0
  %723 = vmatprep.subr.bf16.mxu0 0
  %724 = vmatpush1.bf16.msra.mxu0 0
  %725 = vmatprep.subr.bf16.mxu0 0
  %726 = vmatpush1.bf16.msra.mxu0 0
  %727 = vmatprep.subr.bf16.mxu0 0
  %728 = vmatpush1.bf16.msra.mxu0 0
  %729 = vmatprep.subr.bf16.mxu0 0
  %730 = vmatpush1.bf16.msra.mxu0 0
  %731 = vmatprep.subr.bf16.mxu0 0
  %732 = vmatpush1.bf16.msra.mxu0 0
  %733 = vmatprep.mubr.bf16.mxu0 0
  %734 = vmatmul.mubr.bf16.gmra.mrb[0].mxu0 %v658
  %v735 = vpop.f32.mrb[0].mxu0
  %v736 = vadd.f32 0.0, %v735
  %v737 = vpop.f32.mrb[0].mxu0
  %v738 = vpop.f32.mrb[0].mxu0
  %v739 = vpop.f32.mrb[0].mxu0
  %740 = vdwg.mxu0
  %744 = vrot.lane.b32.xlu0 %v695, 92
  %v745 = vpop.permute.xlu0 %744
  %746 = vrot.lane.b32.xlu0 %v697, 92
  %v747 = vpop.permute.xlu0 %746
  %748 = vrot.lane.b32.xlu0 %v736, 92
  %v749 = vpop.permute.xlu0 %748
  %vm750 = vcmask 752640
  %v751 = vsel %vm750, %v745, %v747
  %v752 = vsel %vm750, %v747, %v749
  %v756 = vadd.f32 %v652, %v751
  %v757 = vadd.f32 %v653, %v752
  %v758 = vadd.f32 %v654, %v749
  %s759 = scalar_lea.vmem %s1, 28
  %v760 = vld [vmem:[%s759] sm:$0xf]
  %v762 = vsel %vm37, %v760, 0
  %764 = vmatprep.subr.bf16.mxu0 %v46
  %765 = vmatpush1.bf16.msra.mxu0 %v43
  %766 = vmatprep.subr.bf16.mxu0 0
  %767 = vmatpush1.bf16.msra.mxu0 0
  %768 = vmatprep.subr.bf16.mxu0 0
  %769 = vmatpush1.bf16.msra.mxu0 0
  %770 = vmatprep.subr.bf16.mxu0 0
  %771 = vmatpush1.bf16.msra.mxu0 0
  %772 = vmatprep.subr.bf16.mxu0 0
  %773 = vmatpush1.bf16.msra.mxu0 0
  %774 = vmatprep.subr.bf16.mxu0 0
  %775 = vmatpush1.bf16.msra.mxu0 0
  %776 = vmatprep.subr.bf16.mxu0 0
  %777 = vmatpush1.bf16.msra.mxu0 0
  %778 = vmatprep.subr.bf16.mxu0 0
  %779 = vmatpush1.bf16.msra.mxu0 0
  %780 = vmatprep.subr.bf16.mxu0 0
  %781 = vmatpush1.bf16.msra.mxu0 0
  %782 = vmatprep.subr.bf16.mxu0 0
  %783 = vmatpush1.bf16.msra.mxu0 0
  %784 = vmatprep.subr.bf16.mxu0 0
  %785 = vmatpush1.bf16.msra.mxu0 0
  %786 = vmatprep.subr.bf16.mxu0 0
  %787 = vmatpush1.bf16.msra.mxu0 0
  %788 = vmatprep.subr.bf16.mxu0 0
  %789 = vmatpush1.bf16.msra.mxu0 0
  %790 = vmatprep.subr.bf16.mxu0 0
  %791 = vmatpush1.bf16.msra.mxu0 0
  %792 = vmatprep.subr.bf16.mxu0 0
  %793 = vmatpush1.bf16.msra.mxu0 0
  %794 = vmatprep.subr.bf16.mxu0 0
  %795 = vmatpush1.bf16.msra.mxu0 0
  %796 = vmatprep.mubr.bf16.mxu0 0
  %797 = vmatmul.mubr.bf16.gmra.mrb[0].mxu0 %v762
  %v798 = vpop.f32.mrb[0].mxu0
  %v799 = vadd.f32 0.0, %v798
  %v800 = vpop.f32.mrb[0].mxu0
  %v801 = vadd.f32 0.0, %v800
  %v802 = vpop.f32.mrb[0].mxu0
  %v803 = vpop.f32.mrb[0].mxu0
  %804 = vdwg.mxu0
  %805 = vmatprep.subr.bf16.mxu0 0
  %806 = vmatpush1.bf16.msra.mxu0 %v49
  %807 = vmatprep.subr.bf16.mxu0 0
  %808 = vmatpush1.bf16.msra.mxu0 0
  %809 = vmatprep.subr.bf16.mxu0 0
  %810 = vmatpush1.bf16.msra.mxu0 0
  %811 = vmatprep.subr.bf16.mxu0 0
  %812 = vmatpush1.bf16.msra.mxu0 0
  %813 = vmatprep.subr.bf16.mxu0 0
  %814 = vmatpush1.bf16.msra.mxu0 0
  %815 = vmatprep.subr.bf16.mxu0 0
  %816 = vmatpush1.bf16.msra.mxu0 0
  %817 = vmatprep.subr.bf16.mxu0 0
  %818 = vmatpush1.bf16.msra.mxu0 0
  %819 = vmatprep.subr.bf16.mxu0 0
  %820 = vmatpush1.bf16.msra.mxu0 0
  %821 = vmatprep.subr.bf16.mxu0 0
  %822 = vmatpush1.bf16.msra.mxu0 0
  %823 = vmatprep.subr.bf16.mxu0 0
  %824 = vmatpush1.bf16.msra.mxu0 0
  %825 = vmatprep.subr.bf16.mxu0 0
  %826 = vmatpush1.bf16.msra.mxu0 0
  %827 = vmatprep.subr.bf16.mxu0 0
  %828 = vmatpush1.bf16.msra.mxu0 0
  %829 = vmatprep.subr.bf16.mxu0 0
  %830 = vmatpush1.bf16.msra.mxu0 0
  %831 = vmatprep.subr.bf16.mxu0 0
  %832 = vmatpush1.bf16.msra.mxu0 0
  %833 = vmatprep.subr.bf16.mxu0 0
  %834 = vmatpush1.bf16.msra.mxu0 0
  %835 = vmatprep.subr.bf16.mxu0 0
  %836 = vmatpush1.bf16.msra.mxu0 0
  %837 = vmatprep.mubr.bf16.mxu0 0
  %838 = vmatmul.mubr.bf16.gmra.mrb[0].mxu0 %v762
  %v839 = vpop.f32.mrb[0].mxu0
  %v840 = vadd.f32 0.0, %v839
  %v841 = vpop.f32.mrb[0].mxu0
  %v842 = vpop.f32.mrb[0].mxu0
  %v843 = vpop.f32.mrb[0].mxu0
  %844 = vdwg.mxu0
  %848 = vrot.lane.b32.xlu0 %v799, 91
  %v849 = vpop.permute.xlu0 %848
  %850 = vrot.lane.b32.xlu0 %v801, 91
  %v851 = vpop.permute.xlu0 %850
  %852 = vrot.lane.b32.xlu0 %v840, 91
  %v853 = vpop.permute.xlu0 %852
  %vm854 = vcmask 744448
  %v855 = vsel %vm854, %v849, %v851
  %v856 = vsel %vm854, %v851, %v853
  %v860 = vadd.f32 %v756, %v855
  %v861 = vadd.f32 %v757, %v856
  %v862 = vadd.f32 %v758, %v853
  %s863 = scalar_lea.vmem %s1, 32
  %v864 = vld [vmem:[%s863] sm:$0xf]
  %v866 = vsel %vm37, %v864, 0
  %868 = vmatprep.subr.bf16.mxu0 %v46
  %869 = vmatpush1.bf16.msra.mxu0 %v43
  %870 = vmatprep.subr.bf16.mxu0 0
  %871 = vmatpush1.bf16.msra.mxu0 0
  %872 = vmatprep.subr.bf16.mxu0 0
  %873 = vmatpush1.bf16.msra.mxu0 0
  %874 = vmatprep.subr.bf16.mxu0 0
  %875 = vmatpush1.bf16.msra.mxu0 0
  %876 = vmatprep.subr.bf16.mxu0 0
  %877 = vmatpush1.bf16.msra.mxu0 0
  %878 = vmatprep.subr.bf16.mxu0 0
  %879 = vmatpush1.bf16.msra.mxu0 0
  %880 = vmatprep.subr.bf16.mxu0 0
  %881 = vmatpush1.bf16.msra.mxu0 0
  %882 = vmatprep.subr.bf16.mxu0 0
  %883 = vmatpush1.bf16.msra.mxu0 0
  %884 = vmatprep.subr.bf16.mxu0 0
  %885 = vmatpush1.bf16.msra.mxu0 0
  %886 = vmatprep.subr.bf16.mxu0 0
  %887 = vmatpush1.bf16.msra.mxu0 0
  %888 = vmatprep.subr.bf16.mxu0 0
  %889 = vmatpush1.bf16.msra.mxu0 0
  %890 = vmatprep.subr.bf16.mxu0 0
  %891 = vmatpush1.bf16.msra.mxu0 0
  %892 = vmatprep.subr.bf16.mxu0 0
  %893 = vmatpush1.bf16.msra.mxu0 0
  %894 = vmatprep.subr.bf16.mxu0 0
  %895 = vmatpush1.bf16.msra.mxu0 0
  %896 = vmatprep.subr.bf16.mxu0 0
  %897 = vmatpush1.bf16.msra.mxu0 0
  %898 = vmatprep.subr.bf16.mxu0 0
  %899 = vmatpush1.bf16.msra.mxu0 0
  %900 = vmatprep.mubr.bf16.mxu0 0
  %901 = vmatmul.mubr.bf16.gmra.mrb[0].mxu0 %v866
  %v902 = vpop.f32.mrb[0].mxu0
  %v903 = vadd.f32 0.0, %v902
  %v904 = vpop.f32.mrb[0].mxu0
  %v905 = vadd.f32 0.0, %v904
  %v906 = vpop.f32.mrb[0].mxu0
  %v907 = vpop.f32.mrb[0].mxu0
  %908 = vdwg.mxu0
  %909 = vmatprep.subr.bf16.mxu0 0
  %910 = vmatpush1.bf16.msra.mxu0 %v49
  %911 = vmatprep.subr.bf16.mxu0 0
  %912 = vmatpush1.bf16.msra.mxu0 0
  %913 = vmatprep.subr.bf16.mxu0 0
  %914 = vmatpush1.bf16.msra.mxu0 0
  %915 = vmatprep.subr.bf16.mxu0 0
  %916 = vmatpush1.bf16.msra.mxu0 0
  %917 = vmatprep.subr.bf16.mxu0 0
  %918 = vmatpush1.bf16.msra.mxu0 0
  %919 = vmatprep.subr.bf16.mxu0 0
  %920 = vmatpush1.bf16.msra.mxu0 0
  %921 = vmatprep.subr.bf16.mxu0 0
  %922 = vmatpush1.bf16.msra.mxu0 0
  %923 = vmatprep.subr.bf16.mxu0 0
  %924 = vmatpush1.bf16.msra.mxu0 0
  %925 = vmatprep.subr.bf16.mxu0 0
  %926 = vmatpush1.bf16.msra.mxu0 0
  %927 = vmatprep.subr.bf16.mxu0 0
  %928 = vmatpush1.bf16.msra.mxu0 0
  %929 = vmatprep.subr.bf16.mxu0 0
  %930 = vmatpush1.bf16.msra.mxu0 0
  %931 = vmatprep.subr.bf16.mxu0 0
  %932 = vmatpush1.bf16.msra.mxu0 0
  %933 = vmatprep.subr.bf16.mxu0 0
  %934 = vmatpush1.bf16.msra.mxu0 0
  %935 = vmatprep.subr.bf16.mxu0 0
  %936 = vmatpush1.bf16.msra.mxu0 0
  %937 = vmatprep.subr.bf16.mxu0 0
  %938 = vmatpush1.bf16.msra.mxu0 0
  %939 = vmatprep.subr.bf16.mxu0 0
  %940 = vmatpush1.bf16.msra.mxu0 0
  %941 = vmatprep.mubr.bf16.mxu0 0
  %942 = vmatmul.mubr.bf16.gmra.mrb[0].mxu0 %v866
  %v943 = vpop.f32.mrb[0].mxu0
  %v944 = vadd.f32 0.0, %v943
  %v945 = vpop.f32.mrb[0].mxu0
  %v946 = vpop.f32.mrb[0].mxu0
  %v947 = vpop.f32.mrb[0].mxu0
  %948 = vdwg.mxu0
  %952 = vrot.lane.b32.xlu0 %v903, 90
  %v953 = vpop.permute.xlu0 %952
  %954 = vrot.lane.b32.xlu0 %v905, 90
  %v955 = vpop.permute.xlu0 %954
  %956 = vrot.lane.b32.xlu0 %v944, 90
  %v957 = vpop.permute.xlu0 %956
  %vm958 = vcmask 736256
  %v959 = vsel %vm958, %v953, %v955
  %v960 = vsel %vm958, %v955, %v957
  %v964 = vadd.f32 %v860, %v959
  %v965 = vadd.f32 %v861, %v960
  %v966 = vadd.f32 %v862, %v957
  %968 = vrot.lane.b32.xlu0 %v964, 126
  %v969 = vpop.permute.xlu0 %968
  %971 = vrot.lane.b32.xlu0 %v964, 124
  %v972 = vpop.permute.xlu0 %971
  %974 = vrot.lane.b32.xlu0 %v964, 122
  %v975 = vpop.permute.xlu0 %974
  %977 = vrot.lane.b32.xlu0 %v964, 120
  %v978 = vpop.permute.xlu0 %977
  %980 = vrot.lane.b32.xlu0 %v964, 118
  %v981 = vpop.permute.xlu0 %980
  %983 = vrot.lane.b32.xlu0 %v964, 116
  %v984 = vpop.permute.xlu0 %983
  %987 = vrot.lane.b32.xlu0 %v964, 114
  %v988 = vpop.permute.xlu0 %987
  %989 = vrot.lane.b32.xlu0 %v965, 114
  %v990 = vpop.permute.xlu0 %989
  %vm991 = vcmask 932864
  %v992 = vsel %vm991, %v988, %v990
  %994 = vrot.lane.b32.xlu0 %v965, 112
  %v995 = vpop.permute.xlu0 %994
  %997 = vrot.lane.b32.xlu0 %v965, 110
  %v998 = vpop.permute.xlu0 %997
  %1000 = vrot.lane.b32.xlu0 %v965, 108
  %v1001 = vpop.permute.xlu0 %1000
  %1003 = vrot.lane.b32.xlu0 %v965, 106
  %v1004 = vpop.permute.xlu0 %1003
  %1006 = vrot.lane.b32.xlu0 %v965, 104
  %v1007 = vpop.permute.xlu0 %1006
  %1009 = vrot.lane.b32.xlu0 %v965, 102
  %v1010 = vpop.permute.xlu0 %1009
  %1013 = vrot.lane.b32.xlu0 %v965, 100
  %v1014 = vpop.permute.xlu0 %1013
  %1015 = vrot.lane.b32.xlu0 %v966, 100
  %v1016 = vpop.permute.xlu0 %1015
  %vm1017 = vcmask 818176
  %v1018 = vsel %vm1017, %v1014, %v1016
  %1020 = vrot.lane.b32.xlu0 %v966, 98
  %v1021 = vpop.permute.xlu0 %1020
  %vm1023 = vcmask 130048
  %v1024 = vsel %vm1023, %v964, %v969
  %vm1025 = vcmask 261120
  %v1026 = vsel %vm1025, %v1024, %v972
  %vm1027 = vcmask 392192
  %v1028 = vsel %vm1027, %v1026, %v975
  %vm1029 = vcmask 523264
  %v1030 = vsel %vm1029, %v1028, %v978
  %vm1031 = vcmask 654336
  %v1032 = vsel %vm1031, %v1030, %v981
  %vm1033 = vcmask 785408
  %v1034 = vsel %vm1033, %v1032, %v984
  %vm1035 = vcmask 916480
  %v1036 = vsel %vm1035, %v1034, %v992
  %v1037 = vsel %vm1023, %v995, %v998
  %v1038 = vsel %vm1025, %v1037, %v1001
  %v1039 = vsel %vm1027, %v1038, %v1004
  %v1040 = vsel %vm1029, %v1039, %v1007
  %v1041 = vsel %vm1031, %v1040, %v1010
  %v1042 = vsel %vm1033, %v1041, %v1018
  %v1043 = vsel %vm1035, %v1042, %v1021
  %v1044 = vadd.f32 %v1036, %v1043
  %1045 = vadd.xlane.f32.xlu0 %v1044
  %v1046 = vpop.xlane.xlu0 %1045
  %v1047 = vadd.f32 %v1046, 0.0
  %v1048 = vmul.f32 %v1036, %v1036
  %v1049 = vmul.f32 %v1043, %v1043
  %v1050 = vadd.f32 %v1048, %v1049
  %1051 = vadd.xlane.f32.xlu0 %v1050
  %v1052 = vpop.xlane.xlu0 %1051
  %v1053 = vadd.f32 %v1052, 0.0
  %s1054 = scalar_lea.vmem %s0, 6
  %v1055 = vld [vmem:[%s1054] sm:$0x3f]
  %v1057 = vcombine.high %v1055, %v1055
  %v1059 = vunpack.c.l.s4 1983009808
  %v1060 = vunpack.c.0.s8 %v1059
  %v1061 = vlaneseq
  %v1062 = vshrl.u32 %v1061, 7
  %v1063 = vsub.s32 %v1060, %v1062
  %v1064 = vrot.slane %v1055, %v1063
  %v1066 = vunpack.c.l.s4 1983009808
  %v1067 = vunpack.c.0.s8 %v1066
  %v1068 = vlaneseq
  %v1069 = vshrl.u32 %v1068, 7
  %v1070 = vsub.s32 %v1067, %v1069
  %v1071 = vrot.slane %v1057, %v1070
  %v1072 = vcombine.high %v1064, %v1064
  %v1074 = vsel %vm41, %v1064, 0
  %v1077 = vsel %vm41, %v1072, 0
  %v1080 = vsel %vm41, %v1071, 0
  %1082 = vmatprep.subr.bf16.mxu0 %v1077
  %1083 = vmatpush1.bf16.msra.mxu0 %v1074
  %1084 = vmatprep.subr.bf16.mxu0 0
  %1085 = vmatpush1.bf16.msra.mxu0 0
  %1086 = vmatprep.subr.bf16.mxu0 0
  %1087 = vmatpush1.bf16.msra.mxu0 0
  %1088 = vmatprep.subr.bf16.mxu0 0
  %1089 = vmatpush1.bf16.msra.mxu0 0
  %1090 = vmatprep.subr.bf16.mxu0 0
  %1091 = vmatpush1.bf16.msra.mxu0 0
  %1092 = vmatprep.subr.bf16.mxu0 0
  %1093 = vmatpush1.bf16.msra.mxu0 0
  %1094 = vmatprep.subr.bf16.mxu0 0
  %1095 = vmatpush1.bf16.msra.mxu0 0
  %1096 = vmatprep.subr.bf16.mxu0 0
  %1097 = vmatpush1.bf16.msra.mxu0 0
  %1098 = vmatprep.subr.bf16.mxu0 0
  %1099 = vmatpush1.bf16.msra.mxu0 0
  %1100 = vmatprep.subr.bf16.mxu0 0
  %1101 = vmatpush1.bf16.msra.mxu0 0
  %1102 = vmatprep.subr.bf16.mxu0 0
  %1103 = vmatpush1.bf16.msra.mxu0 0
  %1104 = vmatprep.subr.bf16.mxu0 0
  %1105 = vmatpush1.bf16.msra.mxu0 0
  %1106 = vmatprep.subr.bf16.mxu0 0
  %1107 = vmatpush1.bf16.msra.mxu0 0
  %1108 = vmatprep.subr.bf16.mxu0 0
  %1109 = vmatpush1.bf16.msra.mxu0 0
  %1110 = vmatprep.subr.bf16.mxu0 0
  %1111 = vmatpush1.bf16.msra.mxu0 0
  %1112 = vmatprep.subr.bf16.mxu0 0
  %1113 = vmatpush1.bf16.msra.mxu0 0
  %1114 = vmatprep.mubr.bf16.mxu0 0
  %1115 = vmatmul.mubr.bf16.gmra.mrb[0].mxu0 %v39
  %v1116 = vpop.f32.mrb[0].mxu0
  %v1117 = vadd.f32 0.0, %v1116
  %v1118 = vpop.f32.mrb[0].mxu0
  %v1119 = vadd.f32 0.0, %v1118
  %v1120 = vpop.f32.mrb[0].mxu0
  %v1121 = vpop.f32.mrb[0].mxu0
  %1122 = vdwg.mxu0
  %1123 = vmatprep.subr.bf16.mxu0 0
  %1124 = vmatpush1.bf16.msra.mxu0 %v1080
  %1125 = vmatprep.subr.bf16.mxu0 0
  %1126 = vmatpush1.bf16.msra.mxu0 0
  %1127 = vmatprep.subr.bf16.mxu0 0
  %1128 = vmatpush1.bf16.msra.mxu0 0
  %1129 = vmatprep.subr.bf16.mxu0 0
  %1130 = vmatpush1.bf16.msra.mxu0 0
  %1131 = vmatprep.subr.bf16.mxu0 0
  %1132 = vmatpush1.bf16.msra.mxu0 0
  %1133 = vmatprep.subr.bf16.mxu0 0
  %1134 = vmatpush1.bf16.msra.mxu0 0
  %1135 = vmatprep.subr.bf16.mxu0 0
  %1136 = vmatpush1.bf16.msra.mxu0 0
  %1137 = vmatprep.subr.bf16.mxu0 0
  %1138 = vmatpush1.bf16.msra.mxu0 0
  %1139 = vmatprep.subr.bf16.mxu0 0
  %1140 = vmatpush1.bf16.msra.mxu0 0
  %1141 = vmatprep.subr.bf16.mxu0 0
  %1142 = vmatpush1.bf16.msra.mxu0 0
  %1143 = vmatprep.subr.bf16.mxu0 0
  %1144 = vmatpush1.bf16.msra.mxu0 0
  %1145 = vmatprep.subr.bf16.mxu0 0
  %1146 = vmatpush1.bf16.msra.mxu0 0
  %1147 = vmatprep.subr.bf16.mxu0 0
  %1148 = vmatpush1.bf16.msra.mxu0 0
  %1149 = vmatprep.subr.bf16.mxu0 0
  %1150 = vmatpush1.bf16.msra.mxu0 0
  %1151 = vmatprep.subr.bf16.mxu0 0
  %1152 = vmatpush1.bf16.msra.mxu0 0
  %1153 = vmatprep.subr.bf16.mxu0 0
  %1154 = vmatpush1.bf16.msra.mxu0 0
  %1155 = vmatprep.mubr.bf16.mxu0 0
  %1156 = vmatmul.mubr.bf16.gmra.mrb[0].mxu0 %v39
  %v1157 = vpop.f32.mrb[0].mxu0
  %v1158 = vadd.f32 0.0, %v1157
  %v1159 = vpop.f32.mrb[0].mxu0
  %v1160 = vpop.f32.mrb[0].mxu0
  %v1161 = vpop.f32.mrb[0].mxu0
  %1162 = vdwg.mxu0
  %v1163 = vadd.f32 %v1117, 0.0
  %v1164 = vadd.f32 %v1119, 0.0
  %v1165 = vadd.f32 %v1158, 0.0
  %1166 = vmatprep.subr.bf16.mxu0 %v1077
  %1167 = vmatpush1.bf16.msra.mxu0 %v1074
  %1168 = vmatprep.subr.bf16.mxu0 0
  %1169 = vmatpush1.bf16.msra.mxu0 0
  %1170 = vmatprep.subr.bf16.mxu0 0
  %1171 = vmatpush1.bf16.msra.mxu0 0
  %1172 = vmatprep.subr.bf16.mxu0 0
  %1173 = vmatpush1.bf16.msra.mxu0 0
  %1174 = vmatprep.subr.bf16.mxu0 0
  %1175 = vmatpush1.bf16.msra.mxu0 0
  %1176 = vmatprep.subr.bf16.mxu0 0
  %1177 = vmatpush1.bf16.msra.mxu0 0
  %1178 = vmatprep.subr.bf16.mxu0 0
  %1179 = vmatpush1.bf16.msra.mxu0 0
  %1180 = vmatprep.subr.bf16.mxu0 0
  %1181 = vmatpush1.bf16.msra.mxu0 0
  %1182 = vmatprep.subr.bf16.mxu0 0
  %1183 = vmatpush1.bf16.msra.mxu0 0
  %1184 = vmatprep.subr.bf16.mxu0 0
  %1185 = vmatpush1.bf16.msra.mxu0 0
  %1186 = vmatprep.subr.bf16.mxu0 0
  %1187 = vmatpush1.bf16.msra.mxu0 0
  %1188 = vmatprep.subr.bf16.mxu0 0
  %1189 = vmatpush1.bf16.msra.mxu0 0
  %1190 = vmatprep.subr.bf16.mxu0 0
  %1191 = vmatpush1.bf16.msra.mxu0 0
  %1192 = vmatprep.subr.bf16.mxu0 0
  %1193 = vmatpush1.bf16.msra.mxu0 0
  %1194 = vmatprep.subr.bf16.mxu0 0
  %1195 = vmatpush1.bf16.msra.mxu0 0
  %1196 = vmatprep.subr.bf16.mxu0 0
  %1197 = vmatpush1.bf16.msra.mxu0 0
  %1198 = vmatprep.mubr.bf16.mxu0 0
  %1199 = vmatmul.mubr.bf16.gmra.mrb[0].mxu0 %v138
  %v1200 = vpop.f32.mrb[0].mxu0
  %v1201 = vadd.f32 0.0, %v1200
  %v1202 = vpop.f32.mrb[0].mxu0
  %v1203 = vadd.f32 0.0, %v1202
  %v1204 = vpop.f32.mrb[0].mxu0
  %v1205 = vpop.f32.mrb[0].mxu0
  %1206 = vdwg.mxu0
  %1207 = vmatprep.subr.bf16.mxu0 0
  %1208 = vmatpush1.bf16.msra.mxu0 %v1080
  %1209 = vmatprep.subr.bf16.mxu0 0
  %1210 = vmatpush1.bf16.msra.mxu0 0
  %1211 = vmatprep.subr.bf16.mxu0 0
  %1212 = vmatpush1.bf16.msra.mxu0 0
  %1213 = vmatprep.subr.bf16.mxu0 0
  %1214 = vmatpush1.bf16.msra.mxu0 0
  %1215 = vmatprep.subr.bf16.mxu0 0
  %1216 = vmatpush1.bf16.msra.mxu0 0
  %1217 = vmatprep.subr.bf16.mxu0 0
  %1218 = vmatpush1.bf16.msra.mxu0 0
  %1219 = vmatprep.subr.bf16.mxu0 0
  %1220 = vmatpush1.bf16.msra.mxu0 0
  %1221 = vmatprep.subr.bf16.mxu0 0
  %1222 = vmatpush1.bf16.msra.mxu0 0
  %1223 = vmatprep.subr.bf16.mxu0 0
  %1224 = vmatpush1.bf16.msra.mxu0 0
  %1225 = vmatprep.subr.bf16.mxu0 0
  %1226 = vmatpush1.bf16.msra.mxu0 0
  %1227 = vmatprep.subr.bf16.mxu0 0
  %1228 = vmatpush1.bf16.msra.mxu0 0
  %1229 = vmatprep.subr.bf16.mxu0 0
  %1230 = vmatpush1.bf16.msra.mxu0 0
  %1231 = vmatprep.subr.bf16.mxu0 0
  %1232 = vmatpush1.bf16.msra.mxu0 0
  %1233 = vmatprep.subr.bf16.mxu0 0
  %1234 = vmatpush1.bf16.msra.mxu0 0
  %1235 = vmatprep.subr.bf16.mxu0 0
  %1236 = vmatpush1.bf16.msra.mxu0 0
  %1237 = vmatprep.subr.bf16.mxu0 0
  %1238 = vmatpush1.bf16.msra.mxu0 0
  %1239 = vmatprep.mubr.bf16.mxu0 0
  %1240 = vmatmul.mubr.bf16.gmra.mrb[0].mxu0 %v138
  %v1241 = vpop.f32.mrb[0].mxu0
  %v1242 = vadd.f32 0.0, %v1241
  %v1243 = vpop.f32.mrb[0].mxu0
  %v1244 = vpop.f32.mrb[0].mxu0
  %v1245 = vpop.f32.mrb[0].mxu0
  %1246 = vdwg.mxu0
  %1250 = vrot.lane.b32.xlu0 %v1201, 127
  %v1251 = vpop.permute.xlu0 %1250
  %1252 = vrot.lane.b32.xlu0 %v1203, 127
  %v1253 = vpop.permute.xlu0 %1252
  %1254 = vrot.lane.b32.xlu0 %v1242, 127
  %v1255 = vpop.permute.xlu0 %1254
  %v1256 = vsel %vm230, %v1251, %v1253
  %v1257 = vsel %vm230, %v1253, %v1255
  %v1261 = vadd.f32 %v1163, %v1256
  %v1262 = vadd.f32 %v1164, %v1257
  %v1263 = vadd.f32 %v1165, %v1255
  %1264 = vmatprep.subr.bf16.mxu0 %v1077
  %1265 = vmatpush1.bf16.msra.mxu0 %v1074
  %1266 = vmatprep.subr.bf16.mxu0 0
  %1267 = vmatpush1.bf16.msra.mxu0 0
  %1268 = vmatprep.subr.bf16.mxu0 0
  %1269 = vmatpush1.bf16.msra.mxu0 0
  %1270 = vmatprep.subr.bf16.mxu0 0
  %1271 = vmatpush1.bf16.msra.mxu0 0
  %1272 = vmatprep.subr.bf16.mxu0 0
  %1273 = vmatpush1.bf16.msra.mxu0 0
  %1274 = vmatprep.subr.bf16.mxu0 0
  %1275 = vmatpush1.bf16.msra.mxu0 0
  %1276 = vmatprep.subr.bf16.mxu0 0
  %1277 = vmatpush1.bf16.msra.mxu0 0
  %1278 = vmatprep.subr.bf16.mxu0 0
  %1279 = vmatpush1.bf16.msra.mxu0 0
  %1280 = vmatprep.subr.bf16.mxu0 0
  %1281 = vmatpush1.bf16.msra.mxu0 0
  %1282 = vmatprep.subr.bf16.mxu0 0
  %1283 = vmatpush1.bf16.msra.mxu0 0
  %1284 = vmatprep.subr.bf16.mxu0 0
  %1285 = vmatpush1.bf16.msra.mxu0 0
  %1286 = vmatprep.subr.bf16.mxu0 0
  %1287 = vmatpush1.bf16.msra.mxu0 0
  %1288 = vmatprep.subr.bf16.mxu0 0
  %1289 = vmatpush1.bf16.msra.mxu0 0
  %1290 = vmatprep.subr.bf16.mxu0 0
  %1291 = vmatpush1.bf16.msra.mxu0 0
  %1292 = vmatprep.subr.bf16.mxu0 0
  %1293 = vmatpush1.bf16.msra.mxu0 0
  %1294 = vmatprep.subr.bf16.mxu0 0
  %1295 = vmatpush1.bf16.msra.mxu0 0
  %1296 = vmatprep.mubr.bf16.mxu0 0
  %1297 = vmatmul.mubr.bf16.gmra.mrb[0].mxu0 %v242
  %v1298 = vpop.f32.mrb[0].mxu0
  %v1299 = vadd.f32 0.0, %v1298
  %v1300 = vpop.f32.mrb[0].mxu0
  %v1301 = vadd.f32 0.0, %v1300
  %v1302 = vpop.f32.mrb[0].mxu0
  %v1303 = vpop.f32.mrb[0].mxu0
  %1304 = vdwg.mxu0
  %1305 = vmatprep.subr.bf16.mxu0 0
  %1306 = vmatpush1.bf16.msra.mxu0 %v1080
  %1307 = vmatprep.subr.bf16.mxu0 0
  %1308 = vmatpush1.bf16.msra.mxu0 0
  %1309 = vmatprep.subr.bf16.mxu0 0
  %1310 = vmatpush1.bf16.msra.mxu0 0
  %1311 = vmatprep.subr.bf16.mxu0 0
  %1312 = vmatpush1.bf16.msra.mxu0 0
  %1313 = vmatprep.subr.bf16.mxu0 0
  %1314 = vmatpush1.bf16.msra.mxu0 0
  %1315 = vmatprep.subr.bf16.mxu0 0
  %1316 = vmatpush1.bf16.msra.mxu0 0
  %1317 = vmatprep.subr.bf16.mxu0 0
  %1318 = vmatpush1.bf16.msra.mxu0 0
  %1319 = vmatprep.subr.bf16.mxu0 0
  %1320 = vmatpush1.bf16.msra.mxu0 0
  %1321 = vmatprep.subr.bf16.mxu0 0
  %1322 = vmatpush1.bf16.msra.mxu0 0
  %1323 = vmatprep.subr.bf16.mxu0 0
  %1324 = vmatpush1.bf16.msra.mxu0 0
  %1325 = vmatprep.subr.bf16.mxu0 0
  %1326 = vmatpush1.bf16.msra.mxu0 0
  %1327 = vmatprep.subr.bf16.mxu0 0
  %1328 = vmatpush1.bf16.msra.mxu0 0
  %1329 = vmatprep.subr.bf16.mxu0 0
  %1330 = vmatpush1.bf16.msra.mxu0 0
  %1331 = vmatprep.subr.bf16.mxu0 0
  %1332 = vmatpush1.bf16.msra.mxu0 0
  %1333 = vmatprep.subr.bf16.mxu0 0
  %1334 = vmatpush1.bf16.msra.mxu0 0
  %1335 = vmatprep.subr.bf16.mxu0 0
  %1336 = vmatpush1.bf16.msra.mxu0 0
  %1337 = vmatprep.mubr.bf16.mxu0 0
  %1338 = vmatmul.mubr.bf16.gmra.mrb[0].mxu0 %v242
  %v1339 = vpop.f32.mrb[0].mxu0
  %v1340 = vadd.f32 0.0, %v1339
  %v1341 = vpop.f32.mrb[0].mxu0
  %v1342 = vpop.f32.mrb[0].mxu0
  %v1343 = vpop.f32.mrb[0].mxu0
  %1344 = vdwg.mxu0
  %1348 = vrot.lane.b32.xlu0 %v1299, 126
  %v1349 = vpop.permute.xlu0 %1348
  %1350 = vrot.lane.b32.xlu0 %v1301, 126
  %v1351 = vpop.permute.xlu0 %1350
  %1352 = vrot.lane.b32.xlu0 %v1340, 126
  %v1353 = vpop.permute.xlu0 %1352
  %v1354 = vsel %vm334, %v1349, %v1351
  %v1355 = vsel %vm334, %v1351, %v1353
  %v1359 = vadd.f32 %v1261, %v1354
  %v1360 = vadd.f32 %v1262, %v1355
  %v1361 = vadd.f32 %v1263, %v1353
  %1362 = vmatprep.subr.bf16.mxu0 %v1077
  %1363 = vmatpush1.bf16.msra.mxu0 %v1074
  %1364 = vmatprep.subr.bf16.mxu0 0
  %1365 = vmatpush1.bf16.msra.mxu0 0
  %1366 = vmatprep.subr.bf16.mxu0 0
  %1367 = vmatpush1.bf16.msra.mxu0 0
  %1368 = vmatprep.subr.bf16.mxu0 0
  %1369 = vmatpush1.bf16.msra.mxu0 0
  %1370 = vmatprep.subr.bf16.mxu0 0
  %1371 = vmatpush1.bf16.msra.mxu0 0
  %1372 = vmatprep.subr.bf16.mxu0 0
  %1373 = vmatpush1.bf16.msra.mxu0 0
  %1374 = vmatprep.subr.bf16.mxu0 0
  %1375 = vmatpush1.bf16.msra.mxu0 0
  %1376 = vmatprep.subr.bf16.mxu0 0
  %1377 = vmatpush1.bf16.msra.mxu0 0
  %1378 = vmatprep.subr.bf16.mxu0 0
  %1379 = vmatpush1.bf16.msra.mxu0 0
  %1380 = vmatprep.subr.bf16.mxu0 0
  %1381 = vmatpush1.bf16.msra.mxu0 0
  %1382 = vmatprep.subr.bf16.mxu0 0
  %1383 = vmatpush1.bf16.msra.mxu0 0
  %1384 = vmatprep.subr.bf16.mxu0 0
  %1385 = vmatpush1.bf16.msra.mxu0 0
  %1386 = vmatprep.subr.bf16.mxu0 0
  %1387 = vmatpush1.bf16.msra.mxu0 0
  %1388 = vmatprep.subr.bf16.mxu0 0
  %1389 = vmatpush1.bf16.msra.mxu0 0
  %1390 = vmatprep.subr.bf16.mxu0 0
  %1391 = vmatpush1.bf16.msra.mxu0 0
  %1392 = vmatprep.subr.bf16.mxu0 0
  %1393 = vmatpush1.bf16.msra.mxu0 0
  %1394 = vmatprep.mubr.bf16.mxu0 0
  %1395 = vmatmul.mubr.bf16.gmra.mrb[0].mxu0 %v346
  %v1396 = vpop.f32.mrb[0].mxu0
  %v1397 = vadd.f32 0.0, %v1396
  %v1398 = vpop.f32.mrb[0].mxu0
  %v1399 = vadd.f32 0.0, %v1398
  %v1400 = vpop.f32.mrb[0].mxu0
  %v1401 = vpop.f32.mrb[0].mxu0
  %1402 = vdwg.mxu0
  %1403 = vmatprep.subr.bf16.mxu0 0
  %1404 = vmatpush1.bf16.msra.mxu0 %v1080
  %1405 = vmatprep.subr.bf16.mxu0 0
  %1406 = vmatpush1.bf16.msra.mxu0 0
  %1407 = vmatprep.subr.bf16.mxu0 0
  %1408 = vmatpush1.bf16.msra.mxu0 0
  %1409 = vmatprep.subr.bf16.mxu0 0
  %1410 = vmatpush1.bf16.msra.mxu0 0
  %1411 = vmatprep.subr.bf16.mxu0 0
  %1412 = vmatpush1.bf16.msra.mxu0 0
  %1413 = vmatprep.subr.bf16.mxu0 0
  %1414 = vmatpush1.bf16.msra.mxu0 0
  %1415 = vmatprep.subr.bf16.mxu0 0
  %1416 = vmatpush1.bf16.msra.mxu0 0
  %1417 = vmatprep.subr.bf16.mxu0 0
  %1418 = vmatpush1.bf16.msra.mxu0 0
  %1419 = vmatprep.subr.bf16.mxu0 0
  %1420 = vmatpush1.bf16.msra.mxu0 0
  %1421 = vmatprep.subr.bf16.mxu0 0
  %1422 = vmatpush1.bf16.msra.mxu0 0
  %1423 = vmatprep.subr.bf16.mxu0 0
  %1424 = vmatpush1.bf16.msra.mxu0 0
  %1425 = vmatprep.subr.bf16.mxu0 0
  %1426 = vmatpush1.bf16.msra.mxu0 0
  %1427 = vmatprep.subr.bf16.mxu0 0
  %1428 = vmatpush1.bf16.msra.mxu0 0
  %1429 = vmatprep.subr.bf16.mxu0 0
  %1430 = vmatpush1.bf16.msra.mxu0 0
  %1431 = vmatprep.subr.bf16.mxu0 0
  %1432 = vmatpush1.bf16.msra.mxu0 0
  %1433 = vmatprep.subr.bf16.mxu0 0
  %1434 = vmatpush1.bf16.msra.mxu0 0
  %1435 = vmatprep.mubr.bf16.mxu0 0
  %1436 = vmatmul.mubr.bf16.gmra.mrb[0].mxu0 %v346
  %v1437 = vpop.f32.mrb[0].mxu0
  %v1438 = vadd.f32 0.0, %v1437
  %v1439 = vpop.f32.mrb[0].mxu0
  %v1440 = vpop.f32.mrb[0].mxu0
  %v1441 = vpop.f32.mrb[0].mxu0
  %1442 = vdwg.mxu0
  %1446 = vrot.lane.b32.xlu0 %v1397, 110
  %v1447 = vpop.permute.xlu0 %1446
  %1448 = vrot.lane.b32.xlu0 %v1399, 110
  %v1449 = vpop.permute.xlu0 %1448
  %1450 = vrot.lane.b32.xlu0 %v1438, 110
  %v1451 = vpop.permute.xlu0 %1450
  %v1452 = vsel %vm438, %v1447, %v1449
  %v1453 = vsel %vm438, %v1449, %v1451
  %v1457 = vadd.f32 %v1359, %v1452
  %v1458 = vadd.f32 %v1360, %v1453
  %v1459 = vadd.f32 %v1361, %v1451
  %1460 = vmatprep.subr.bf16.mxu0 %v1077
  %1461 = vmatpush1.bf16.msra.mxu0 %v1074
  %1462 = vmatprep.subr.bf16.mxu0 0
  %1463 = vmatpush1.bf16.msra.mxu0 0
  %1464 = vmatprep.subr.bf16.mxu0 0
  %1465 = vmatpush1.bf16.msra.mxu0 0
  %1466 = vmatprep.subr.bf16.mxu0 0
  %1467 = vmatpush1.bf16.msra.mxu0 0
  %1468 = vmatprep.subr.bf16.mxu0 0
  %1469 = vmatpush1.bf16.msra.mxu0 0
  %1470 = vmatprep.subr.bf16.mxu0 0
  %1471 = vmatpush1.bf16.msra.mxu0 0
  %1472 = vmatprep.subr.bf16.mxu0 0
  %1473 = vmatpush1.bf16.msra.mxu0 0
  %1474 = vmatprep.subr.bf16.mxu0 0
  %1475 = vmatpush1.bf16.msra.mxu0 0
  %1476 = vmatprep.subr.bf16.mxu0 0
  %1477 = vmatpush1.bf16.msra.mxu0 0
  %1478 = vmatprep.subr.bf16.mxu0 0
  %1479 = vmatpush1.bf16.msra.mxu0 0
  %1480 = vmatprep.subr.bf16.mxu0 0
  %1481 = vmatpush1.bf16.msra.mxu0 0
  %1482 = vmatprep.subr.bf16.mxu0 0
  %1483 = vmatpush1.bf16.msra.mxu0 0
  %1484 = vmatprep.subr.bf16.mxu0 0
  %1485 = vmatpush1.bf16.msra.mxu0 0
  %1486 = vmatprep.subr.bf16.mxu0 0
  %1487 = vmatpush1.bf16.msra.mxu0 0
  %1488 = vmatprep.subr.bf16.mxu0 0
  %1489 = vmatpush1.bf16.msra.mxu0 0
  %1490 = vmatprep.subr.bf16.mxu0 0
  %1491 = vmatpush1.bf16.msra.mxu0 0
  %1492 = vmatprep.mubr.bf16.mxu0 0
  %1493 = vmatmul.mubr.bf16.gmra.mrb[0].mxu0 %v450
  %v1494 = vpop.f32.mrb[0].mxu0
  %v1495 = vadd.f32 0.0, %v1494
  %v1496 = vpop.f32.mrb[0].mxu0
  %v1497 = vadd.f32 0.0, %v1496
  %v1498 = vpop.f32.mrb[0].mxu0
  %v1499 = vpop.f32.mrb[0].mxu0
  %1500 = vdwg.mxu0
  %1501 = vmatprep.subr.bf16.mxu0 0
  %1502 = vmatpush1.bf16.msra.mxu0 %v1080
  %1503 = vmatprep.subr.bf16.mxu0 0
  %1504 = vmatpush1.bf16.msra.mxu0 0
  %1505 = vmatprep.subr.bf16.mxu0 0
  %1506 = vmatpush1.bf16.msra.mxu0 0
  %1507 = vmatprep.subr.bf16.mxu0 0
  %1508 = vmatpush1.bf16.msra.mxu0 0
  %1509 = vmatprep.subr.bf16.mxu0 0
  %1510 = vmatpush1.bf16.msra.mxu0 0
  %1511 = vmatprep.subr.bf16.mxu0 0
  %1512 = vmatpush1.bf16.msra.mxu0 0
  %1513 = vmatprep.subr.bf16.mxu0 0
  %1514 = vmatpush1.bf16.msra.mxu0 0
  %1515 = vmatprep.subr.bf16.mxu0 0
  %1516 = vmatpush1.bf16.msra.mxu0 0
  %1517 = vmatprep.subr.bf16.mxu0 0
  %1518 = vmatpush1.bf16.msra.mxu0 0
  %1519 = vmatprep.subr.bf16.mxu0 0
  %1520 = vmatpush1.bf16.msra.mxu0 0
  %1521 = vmatprep.subr.bf16.mxu0 0
  %1522 = vmatpush1.bf16.msra.mxu0 0
  %1523 = vmatprep.subr.bf16.mxu0 0
  %1524 = vmatpush1.bf16.msra.mxu0 0
  %1525 = vmatprep.subr.bf16.mxu0 0
  %1526 = vmatpush1.bf16.msra.mxu0 0
  %1527 = vmatprep.subr.bf16.mxu0 0
  %1528 = vmatpush1.bf16.msra.mxu0 0
  %1529 = vmatprep.subr.bf16.mxu0 0
  %1530 = vmatpush1.bf16.msra.mxu0 0
  %1531 = vmatprep.subr.bf16.mxu0 0
  %1532 = vmatpush1.bf16.msra.mxu0 0
  %1533 = vmatprep.mubr.bf16.mxu0 0
  %1534 = vmatmul.mubr.bf16.gmra.mrb[0].mxu0 %v450
  %v1535 = vpop.f32.mrb[0].mxu0
  %v1536 = vadd.f32 0.0, %v1535
  %v1537 = vpop.f32.mrb[0].mxu0
  %v1538 = vpop.f32.mrb[0].mxu0
  %v1539 = vpop.f32.mrb[0].mxu0
  %1540 = vdwg.mxu0
  %1544 = vrot.lane.b32.xlu0 %v1495, 109
  %v1545 = vpop.permute.xlu0 %1544
  %1546 = vrot.lane.b32.xlu0 %v1497, 109
  %v1547 = vpop.permute.xlu0 %1546
  %1548 = vrot.lane.b32.xlu0 %v1536, 109
  %v1549 = vpop.permute.xlu0 %1548
  %v1550 = vsel %vm542, %v1545, %v1547
  %v1551 = vsel %vm542, %v1547, %v1549
  %v1555 = vadd.f32 %v1457, %v1550
  %v1556 = vadd.f32 %v1458, %v1551
  %v1557 = vadd.f32 %v1459, %v1549
  %1558 = vmatprep.subr.bf16.mxu0 %v1077
  %1559 = vmatpush1.bf16.msra.mxu0 %v1074
  %1560 = vmatprep.subr.bf16.mxu0 0
  %1561 = vmatpush1.bf16.msra.mxu0 0
  %1562 = vmatprep.subr.bf16.mxu0 0
  %1563 = vmatpush1.bf16.msra.mxu0 0
  %1564 = vmatprep.subr.bf16.mxu0 0
  %1565 = vmatpush1.bf16.msra.mxu0 0
  %1566 = vmatprep.subr.bf16.mxu0 0
  %1567 = vmatpush1.bf16.msra.mxu0 0
  %1568 = vmatprep.subr.bf16.mxu0 0
  %1569 = vmatpush1.bf16.msra.mxu0 0
  %1570 = vmatprep.subr.bf16.mxu0 0
  %1571 = vmatpush1.bf16.msra.mxu0 0
  %1572 = vmatprep.subr.bf16.mxu0 0
  %1573 = vmatpush1.bf16.msra.mxu0 0
  %1574 = vmatprep.subr.bf16.mxu0 0
  %1575 = vmatpush1.bf16.msra.mxu0 0
  %1576 = vmatprep.subr.bf16.mxu0 0
  %1577 = vmatpush1.bf16.msra.mxu0 0
  %1578 = vmatprep.subr.bf16.mxu0 0
  %1579 = vmatpush1.bf16.msra.mxu0 0
  %1580 = vmatprep.subr.bf16.mxu0 0
  %1581 = vmatpush1.bf16.msra.mxu0 0
  %1582 = vmatprep.subr.bf16.mxu0 0
  %1583 = vmatpush1.bf16.msra.mxu0 0
  %1584 = vmatprep.subr.bf16.mxu0 0
  %1585 = vmatpush1.bf16.msra.mxu0 0
  %1586 = vmatprep.subr.bf16.mxu0 0
  %1587 = vmatpush1.bf16.msra.mxu0 0
  %1588 = vmatprep.subr.bf16.mxu0 0
  %1589 = vmatpush1.bf16.msra.mxu0 0
  %1590 = vmatprep.mubr.bf16.mxu0 0
  %1591 = vmatmul.mubr.bf16.gmra.mrb[0].mxu0 %v554
  %v1592 = vpop.f32.mrb[0].mxu0
  %v1593 = vadd.f32 0.0, %v1592
  %v1594 = vpop.f32.mrb[0].mxu0
  %v1595 = vadd.f32 0.0, %v1594
  %v1596 = vpop.f32.mrb[0].mxu0
  %v1597 = vpop.f32.mrb[0].mxu0
  %1598 = vdwg.mxu0
  %1599 = vmatprep.subr.bf16.mxu0 0
  %1600 = vmatpush1.bf16.msra.mxu0 %v1080
  %1601 = vmatprep.subr.bf16.mxu0 0
  %1602 = vmatpush1.bf16.msra.mxu0 0
  %1603 = vmatprep.subr.bf16.mxu0 0
  %1604 = vmatpush1.bf16.msra.mxu0 0
  %1605 = vmatprep.subr.bf16.mxu0 0
  %1606 = vmatpush1.bf16.msra.mxu0 0
  %1607 = vmatprep.subr.bf16.mxu0 0
  %1608 = vmatpush1.bf16.msra.mxu0 0
  %1609 = vmatprep.subr.bf16.mxu0 0
  %1610 = vmatpush1.bf16.msra.mxu0 0
  %1611 = vmatprep.subr.bf16.mxu0 0
  %1612 = vmatpush1.bf16.msra.mxu0 0
  %1613 = vmatprep.subr.bf16.mxu0 0
  %1614 = vmatpush1.bf16.msra.mxu0 0
  %1615 = vmatprep.subr.bf16.mxu0 0
  %1616 = vmatpush1.bf16.msra.mxu0 0
  %1617 = vmatprep.subr.bf16.mxu0 0
  %1618 = vmatpush1.bf16.msra.mxu0 0
  %1619 = vmatprep.subr.bf16.mxu0 0
  %1620 = vmatpush1.bf16.msra.mxu0 0
  %1621 = vmatprep.subr.bf16.mxu0 0
  %1622 = vmatpush1.bf16.msra.mxu0 0
  %1623 = vmatprep.subr.bf16.mxu0 0
  %1624 = vmatpush1.bf16.msra.mxu0 0
  %1625 = vmatprep.subr.bf16.mxu0 0
  %1626 = vmatpush1.bf16.msra.mxu0 0
  %1627 = vmatprep.subr.bf16.mxu0 0
  %1628 = vmatpush1.bf16.msra.mxu0 0
  %1629 = vmatprep.subr.bf16.mxu0 0
  %1630 = vmatpush1.bf16.msra.mxu0 0
  %1631 = vmatprep.mubr.bf16.mxu0 0
  %1632 = vmatmul.mubr.bf16.gmra.mrb[0].mxu0 %v554
  %v1633 = vpop.f32.mrb[0].mxu0
  %v1634 = vadd.f32 0.0, %v1633
  %v1635 = vpop.f32.mrb[0].mxu0
  %v1636 = vpop.f32.mrb[0].mxu0
  %v1637 = vpop.f32.mrb[0].mxu0
  %1638 = vdwg.mxu0
  %1642 = vrot.lane.b32.xlu0 %v1593, 108
  %v1643 = vpop.permute.xlu0 %1642
  %1644 = vrot.lane.b32.xlu0 %v1595, 108
  %v1645 = vpop.permute.xlu0 %1644
  %1646 = vrot.lane.b32.xlu0 %v1634, 108
  %v1647 = vpop.permute.xlu0 %1646
  %v1648 = vsel %vm646, %v1643, %v1645
  %v1649 = vsel %vm646, %v1645, %v1647
  %v1653 = vadd.f32 %v1555, %v1648
  %v1654 = vadd.f32 %v1556, %v1649
  %v1655 = vadd.f32 %v1557, %v1647
  %1656 = vmatprep.subr.bf16.mxu0 %v1077
  %1657 = vmatpush1.bf16.msra.mxu0 %v1074
  %1658 = vmatprep.subr.bf16.mxu0 0
  %1659 = vmatpush1.bf16.msra.mxu0 0
  %1660 = vmatprep.subr.bf16.mxu0 0
  %1661 = vmatpush1.bf16.msra.mxu0 0
  %1662 = vmatprep.subr.bf16.mxu0 0
  %1663 = vmatpush1.bf16.msra.mxu0 0
  %1664 = vmatprep.subr.bf16.mxu0 0
  %1665 = vmatpush1.bf16.msra.mxu0 0
  %1666 = vmatprep.subr.bf16.mxu0 0
  %1667 = vmatpush1.bf16.msra.mxu0 0
  %1668 = vmatprep.subr.bf16.mxu0 0
  %1669 = vmatpush1.bf16.msra.mxu0 0
  %1670 = vmatprep.subr.bf16.mxu0 0
  %1671 = vmatpush1.bf16.msra.mxu0 0
  %1672 = vmatprep.subr.bf16.mxu0 0
  %1673 = vmatpush1.bf16.msra.mxu0 0
  %1674 = vmatprep.subr.bf16.mxu0 0
  %1675 = vmatpush1.bf16.msra.mxu0 0
  %1676 = vmatprep.subr.bf16.mxu0 0
  %1677 = vmatpush1.bf16.msra.mxu0 0
  %1678 = vmatprep.subr.bf16.mxu0 0
  %1679 = vmatpush1.bf16.msra.mxu0 0
  %1680 = vmatprep.subr.bf16.mxu0 0
  %1681 = vmatpush1.bf16.msra.mxu0 0
  %1682 = vmatprep.subr.bf16.mxu0 0
  %1683 = vmatpush1.bf16.msra.mxu0 0
  %1684 = vmatprep.subr.bf16.mxu0 0
  %1685 = vmatpush1.bf16.msra.mxu0 0
  %1686 = vmatprep.subr.bf16.mxu0 0
  %1687 = vmatpush1.bf16.msra.mxu0 0
  %1688 = vmatprep.mubr.bf16.mxu0 0
  %1689 = vmatmul.mubr.bf16.gmra.mrb[0].mxu0 %v658
  %v1690 = vpop.f32.mrb[0].mxu0
  %v1691 = vadd.f32 0.0, %v1690
  %v1692 = vpop.f32.mrb[0].mxu0
  %v1693 = vadd.f32 0.0, %v1692
  %v1694 = vpop.f32.mrb[0].mxu0
  %v1695 = vpop.f32.mrb[0].mxu0
  %1696 = vdwg.mxu0
  %1697 = vmatprep.subr.bf16.mxu0 0
  %1698 = vmatpush1.bf16.msra.mxu0 %v1080
  %1699 = vmatprep.subr.bf16.mxu0 0
  %1700 = vmatpush1.bf16.msra.mxu0 0
  %1701 = vmatprep.subr.bf16.mxu0 0
  %1702 = vmatpush1.bf16.msra.mxu0 0
  %1703 = vmatprep.subr.bf16.mxu0 0
  %1704 = vmatpush1.bf16.msra.mxu0 0
  %1705 = vmatprep.subr.bf16.mxu0 0
  %1706 = vmatpush1.bf16.msra.mxu0 0
  %1707 = vmatprep.subr.bf16.mxu0 0
  %1708 = vmatpush1.bf16.msra.mxu0 0
  %1709 = vmatprep.subr.bf16.mxu0 0
  %1710 = vmatpush1.bf16.msra.mxu0 0
  %1711 = vmatprep.subr.bf16.mxu0 0
  %1712 = vmatpush1.bf16.msra.mxu0 0
  %1713 = vmatprep.subr.bf16.mxu0 0
  %1714 = vmatpush1.bf16.msra.mxu0 0
  %1715 = vmatprep.subr.bf16.mxu0 0
  %1716 = vmatpush1.bf16.msra.mxu0 0
  %1717 = vmatprep.subr.bf16.mxu0 0
  %1718 = vmatpush1.bf16.msra.mxu0 0
  %1719 = vmatprep.subr.bf16.mxu0 0
  %1720 = vmatpush1.bf16.msra.mxu0 0
  %1721 = vmatprep.subr.bf16.mxu0 0
  %1722 = vmatpush1.bf16.msra.mxu0 0
  %1723 = vmatprep.subr.bf16.mxu0 0
  %1724 = vmatpush1.bf16.msra.mxu0 0
  %1725 = vmatprep.subr.bf16.mxu0 0
  %1726 = vmatpush1.bf16.msra.mxu0 0
  %1727 = vmatprep.subr.bf16.mxu0 0
  %1728 = vmatpush1.bf16.msra.mxu0 0
  %1729 = vmatprep.mubr.bf16.mxu0 0
  %1730 = vmatmul.mubr.bf16.gmra.mrb[0].mxu0 %v658
  %v1731 = vpop.f32.mrb[0].mxu0
  %v1732 = vadd.f32 0.0, %v1731
  %v1733 = vpop.f32.mrb[0].mxu0
  %v1734 = vpop.f32.mrb[0].mxu0
  %v1735 = vpop.f32.mrb[0].mxu0
  %1736 = vdwg.mxu0
  %1740 = vrot.lane.b32.xlu0 %v1691, 92
  %v1741 = vpop.permute.xlu0 %1740
  %1742 = vrot.lane.b32.xlu0 %v1693, 92
  %v1743 = vpop.permute.xlu0 %1742
  %1744 = vrot.lane.b32.xlu0 %v1732, 92
  %v1745 = vpop.permute.xlu0 %1744
  %v1746 = vsel %vm750, %v1741, %v1743
  %v1747 = vsel %vm750, %v1743, %v1745
  %v1751 = vadd.f32 %v1653, %v1746
  %v1752 = vadd.f32 %v1654, %v1747
  %v1753 = vadd.f32 %v1655, %v1745
  %1754 = vmatprep.subr.bf16.mxu0 %v1077
  %1755 = vmatpush1.bf16.msra.mxu0 %v1074
  %1756 = vmatprep.subr.bf16.mxu0 0
  %1757 = vmatpush1.bf16.msra.mxu0 0
  %1758 = vmatprep.subr.bf16.mxu0 0
  %1759 = vmatpush1.bf16.msra.mxu0 0
  %1760 = vmatprep.subr.bf16.mxu0 0
  %1761 = vmatpush1.bf16.msra.mxu0 0
  %1762 = vmatprep.subr.bf16.mxu0 0
  %1763 = vmatpush1.bf16.msra.mxu0 0
  %1764 = vmatprep.subr.bf16.mxu0 0
  %1765 = vmatpush1.bf16.msra.mxu0 0
  %1766 = vmatprep.subr.bf16.mxu0 0
  %1767 = vmatpush1.bf16.msra.mxu0 0
  %1768 = vmatprep.subr.bf16.mxu0 0
  %1769 = vmatpush1.bf16.msra.mxu0 0
  %1770 = vmatprep.subr.bf16.mxu0 0
  %1771 = vmatpush1.bf16.msra.mxu0 0
  %1772 = vmatprep.subr.bf16.mxu0 0
  %1773 = vmatpush1.bf16.msra.mxu0 0
  %1774 = vmatprep.subr.bf16.mxu0 0
  %1775 = vmatpush1.bf16.msra.mxu0 0
  %1776 = vmatprep.subr.bf16.mxu0 0
  %1777 = vmatpush1.bf16.msra.mxu0 0
  %1778 = vmatprep.subr.bf16.mxu0 0
  %1779 = vmatpush1.bf16.msra.mxu0 0
  %1780 = vmatprep.subr.bf16.mxu0 0
  %1781 = vmatpush1.bf16.msra.mxu0 0
  %1782 = vmatprep.subr.bf16.mxu0 0
  %1783 = vmatpush1.bf16.msra.mxu0 0
  %1784 = vmatprep.subr.bf16.mxu0 0
  %1785 = vmatpush1.bf16.msra.mxu0 0
  %1786 = vmatprep.mubr.bf16.mxu0 0
  %1787 = vmatmul.mubr.bf16.gmra.mrb[0].mxu0 %v762
  %v1788 = vpop.f32.mrb[0].mxu0
  %v1789 = vadd.f32 0.0, %v1788
  %v1790 = vpop.f32.mrb[0].mxu0
  %v1791 = vadd.f32 0.0, %v1790
  %v1792 = vpop.f32.mrb[0].mxu0
  %v1793 = vpop.f32.mrb[0].mxu0
  %1794 = vdwg.mxu0
  %1795 = vmatprep.subr.bf16.mxu0 0
  %1796 = vmatpush1.bf16.msra.mxu0 %v1080
  %1797 = vmatprep.subr.bf16.mxu0 0
  %1798 = vmatpush1.bf16.msra.mxu0 0
  %1799 = vmatprep.subr.bf16.mxu0 0
  %1800 = vmatpush1.bf16.msra.mxu0 0
  %1801 = vmatprep.subr.bf16.mxu0 0
  %1802 = vmatpush1.bf16.msra.mxu0 0
  %1803 = vmatprep.subr.bf16.mxu0 0
  %1804 = vmatpush1.bf16.msra.mxu0 0
  %1805 = vmatprep.subr.bf16.mxu0 0
  %1806 = vmatpush1.bf16.msra.mxu0 0
  %1807 = vmatprep.subr.bf16.mxu0 0
  %1808 = vmatpush1.bf16.msra.mxu0 0
  %1809 = vmatprep.subr.bf16.mxu0 0
  %1810 = vmatpush1.bf16.msra.mxu0 0
  %1811 = vmatprep.subr.bf16.mxu0 0
  %1812 = vmatpush1.bf16.msra.mxu0 0
  %1813 = vmatprep.subr.bf16.mxu0 0
  %1814 = vmatpush1.bf16.msra.mxu0 0
  %1815 = vmatprep.subr.bf16.mxu0 0
  %1816 = vmatpush1.bf16.msra.mxu0 0
  %1817 = vmatprep.subr.bf16.mxu0 0
  %1818 = vmatpush1.bf16.msra.mxu0 0
  %1819 = vmatprep.subr.bf16.mxu0 0
  %1820 = vmatpush1.bf16.msra.mxu0 0
  %1821 = vmatprep.subr.bf16.mxu0 0
  %1822 = vmatpush1.bf16.msra.mxu0 0
  %1823 = vmatprep.subr.bf16.mxu0 0
  %1824 = vmatpush1.bf16.msra.mxu0 0
  %1825 = vmatprep.subr.bf16.mxu0 0
  %1826 = vmatpush1.bf16.msra.mxu0 0
  %1827 = vmatprep.mubr.bf16.mxu0 0
  %1828 = vmatmul.mubr.bf16.gmra.mrb[0].mxu0 %v762
  %v1829 = vpop.f32.mrb[0].mxu0
  %v1830 = vadd.f32 0.0, %v1829
  %v1831 = vpop.f32.mrb[0].mxu0
  %v1832 = vpop.f32.mrb[0].mxu0
  %v1833 = vpop.f32.mrb[0].mxu0
  %1834 = vdwg.mxu0
  %1838 = vrot.lane.b32.xlu0 %v1789, 91
  %v1839 = vpop.permute.xlu0 %1838
  %1840 = vrot.lane.b32.xlu0 %v1791, 91
  %v1841 = vpop.permute.xlu0 %1840
  %1842 = vrot.lane.b32.xlu0 %v1830, 91
  %v1843 = vpop.permute.xlu0 %1842
  %v1844 = vsel %vm854, %v1839, %v1841
  %v1845 = vsel %vm854, %v1841, %v1843
  %v1849 = vadd.f32 %v1751, %v1844
  %v1850 = vadd.f32 %v1752, %v1845
  %v1851 = vadd.f32 %v1753, %v1843
  %1852 = vmatprep.subr.bf16.mxu0 %v1077
  %1853 = vmatpush1.bf16.msra.mxu0 %v1074
  %1854 = vmatprep.subr.bf16.mxu0 0
  %1855 = vmatpush1.bf16.msra.mxu0 0
  %1856 = vmatprep.subr.bf16.mxu0 0
  %1857 = vmatpush1.bf16.msra.mxu0 0
  %1858 = vmatprep.subr.bf16.mxu0 0
  %1859 = vmatpush1.bf16.msra.mxu0 0
  %1860 = vmatprep.subr.bf16.mxu0 0
  %1861 = vmatpush1.bf16.msra.mxu0 0
  %1862 = vmatprep.subr.bf16.mxu0 0
  %1863 = vmatpush1.bf16.msra.mxu0 0
  %1864 = vmatprep.subr.bf16.mxu0 0
  %1865 = vmatpush1.bf16.msra.mxu0 0
  %1866 = vmatprep.subr.bf16.mxu0 0
  %1867 = vmatpush1.bf16.msra.mxu0 0
  %1868 = vmatprep.subr.bf16.mxu0 0
  %1869 = vmatpush1.bf16.msra.mxu0 0
  %1870 = vmatprep.subr.bf16.mxu0 0
  %1871 = vmatpush1.bf16.msra.mxu0 0
  %1872 = vmatprep.subr.bf16.mxu0 0
  %1873 = vmatpush1.bf16.msra.mxu0 0
  %1874 = vmatprep.subr.bf16.mxu0 0
  %1875 = vmatpush1.bf16.msra.mxu0 0
  %1876 = vmatprep.subr.bf16.mxu0 0
  %1877 = vmatpush1.bf16.msra.mxu0 0
  %1878 = vmatprep.subr.bf16.mxu0 0
  %1879 = vmatpush1.bf16.msra.mxu0 0
  %1880 = vmatprep.subr.bf16.mxu0 0
  %1881 = vmatpush1.bf16.msra.mxu0 0
  %1882 = vmatprep.subr.bf16.mxu0 0
  %1883 = vmatpush1.bf16.msra.mxu0 0
  %1884 = vmatprep.mubr.bf16.mxu0 0
  %1885 = vmatmul.mubr.bf16.gmra.mrb[0].mxu0 %v866
  %v1886 = vpop.f32.mrb[0].mxu0
  %v1887 = vadd.f32 0.0, %v1886
  %v1888 = vpop.f32.mrb[0].mxu0
  %v1889 = vadd.f32 0.0, %v1888
  %v1890 = vpop.f32.mrb[0].mxu0
  %v1891 = vpop.f32.mrb[0].mxu0
  %1892 = vdwg.mxu0
  %1893 = vmatprep.subr.bf16.mxu0 0
  %1894 = vmatpush1.bf16.msra.mxu0 %v1080
  %1895 = vmatprep.subr.bf16.mxu0 0
  %1896 = vmatpush1.bf16.msra.mxu0 0
  %1897 = vmatprep.subr.bf16.mxu0 0
  %1898 = vmatpush1.bf16.msra.mxu0 0
  %1899 = vmatprep.subr.bf16.mxu0 0
  %1900 = vmatpush1.bf16.msra.mxu0 0
  %1901 = vmatprep.subr.bf16.mxu0 0
  %1902 = vmatpush1.bf16.msra.mxu0 0
  %1903 = vmatprep.subr.bf16.mxu0 0
  %1904 = vmatpush1.bf16.msra.mxu0 0
  %1905 = vmatprep.subr.bf16.mxu0 0
  %1906 = vmatpush1.bf16.msra.mxu0 0
  %1907 = vmatprep.subr.bf16.mxu0 0
  %1908 = vmatpush1.bf16.msra.mxu0 0
  %1909 = vmatprep.subr.bf16.mxu0 0
  %1910 = vmatpush1.bf16.msra.mxu0 0
  %1911 = vmatprep.subr.bf16.mxu0 0
  %1912 = vmatpush1.bf16.msra.mxu0 0
  %1913 = vmatprep.subr.bf16.mxu0 0
  %1914 = vmatpush1.bf16.msra.mxu0 0
  %1915 = vmatprep.subr.bf16.mxu0 0
  %1916 = vmatpush1.bf16.msra.mxu0 0
  %1917 = vmatprep.subr.bf16.mxu0 0
  %1918 = vmatpush1.bf16.msra.mxu0 0
  %1919 = vmatprep.subr.bf16.mxu0 0
  %1920 = vmatpush1.bf16.msra.mxu0 0
  %1921 = vmatprep.subr.bf16.mxu0 0
  %1922 = vmatpush1.bf16.msra.mxu0 0
  %1923 = vmatprep.subr.bf16.mxu0 0
  %1924 = vmatpush1.bf16.msra.mxu0 0
  %1925 = vmatprep.mubr.bf16.mxu0 0
  %1926 = vmatmul.mubr.bf16.gmra.mrb[0].mxu0 %v866
  %v1927 = vpop.f32.mrb[0].mxu0
  %v1928 = vadd.f32 0.0, %v1927
  %v1929 = vpop.f32.mrb[0].mxu0
  %v1930 = vpop.f32.mrb[0].mxu0
  %v1931 = vpop.f32.mrb[0].mxu0
  %1932 = vdwg.mxu0
  %1936 = vrot.lane.b32.xlu0 %v1887, 90
  %v1937 = vpop.permute.xlu0 %1936
  %1938 = vrot.lane.b32.xlu0 %v1889, 90
  %v1939 = vpop.permute.xlu0 %1938
  %1940 = vrot.lane.b32.xlu0 %v1928, 90
  %v1941 = vpop.permute.xlu0 %1940
  %v1942 = vsel %vm958, %v1937, %v1939
  %v1943 = vsel %vm958, %v1939, %v1941
  %v1947 = vadd.f32 %v1849, %v1942
  %v1948 = vadd.f32 %v1850, %v1943
  %v1949 = vadd.f32 %v1851, %v1941
  %1951 = vrot.lane.b32.xlu0 %v1947, 126
  %v1952 = vpop.permute.xlu0 %1951
  %1954 = vrot.lane.b32.xlu0 %v1947, 124
  %v1955 = vpop.permute.xlu0 %1954
  %1957 = vrot.lane.b32.xlu0 %v1947, 122
  %v1958 = vpop.permute.xlu0 %1957
  %1960 = vrot.lane.b32.xlu0 %v1947, 120
  %v1961 = vpop.permute.xlu0 %1960
  %1963 = vrot.lane.b32.xlu0 %v1947, 118
  %v1964 = vpop.permute.xlu0 %1963
  %1966 = vrot.lane.b32.xlu0 %v1947, 116
  %v1967 = vpop.permute.xlu0 %1966
  %1970 = vrot.lane.b32.xlu0 %v1947, 114
  %v1971 = vpop.permute.xlu0 %1970
  %1972 = vrot.lane.b32.xlu0 %v1948, 114
  %v1973 = vpop.permute.xlu0 %1972
  %v1974 = vsel %vm991, %v1971, %v1973
  %1976 = vrot.lane.b32.xlu0 %v1948, 112
  %v1977 = vpop.permute.xlu0 %1976
  %1979 = vrot.lane.b32.xlu0 %v1948, 110
  %v1980 = vpop.permute.xlu0 %1979
  %1982 = vrot.lane.b32.xlu0 %v1948, 108
  %v1983 = vpop.permute.xlu0 %1982
  %1985 = vrot.lane.b32.xlu0 %v1948, 106
  %v1986 = vpop.permute.xlu0 %1985
  %1988 = vrot.lane.b32.xlu0 %v1948, 104
  %v1989 = vpop.permute.xlu0 %1988
  %1991 = vrot.lane.b32.xlu0 %v1948, 102
  %v1992 = vpop.permute.xlu0 %1991
  %1995 = vrot.lane.b32.xlu0 %v1948, 100
  %v1996 = vpop.permute.xlu0 %1995
  %1997 = vrot.lane.b32.xlu0 %v1949, 100
  %v1998 = vpop.permute.xlu0 %1997
  %v1999 = vsel %vm1017, %v1996, %v1998
  %2001 = vrot.lane.b32.xlu0 %v1949, 98
  %v2002 = vpop.permute.xlu0 %2001
  %v2004 = vsel %vm1023, %v1947, %v1952
  %v2005 = vsel %vm1025, %v2004, %v1955
  %v2006 = vsel %vm1027, %v2005, %v1958
  %v2007 = vsel %vm1029, %v2006, %v1961
  %v2008 = vsel %vm1031, %v2007, %v1964
  %v2009 = vsel %vm1033, %v2008, %v1967
  %v2010 = vsel %vm1035, %v2009, %v1974
  %v2011 = vsel %vm1023, %v1977, %v1980
  %v2012 = vsel %vm1025, %v2011, %v1983
  %v2013 = vsel %vm1027, %v2012, %v1986
  %v2014 = vsel %vm1029, %v2013, %v1989
  %v2015 = vsel %vm1031, %v2014, %v1992
  %v2016 = vsel %vm1033, %v2015, %v1999
  %v2017 = vsel %vm1035, %v2016, %v2002
  %v2018 = vadd.f32 %v2010, %v2017
  %2019 = vadd.xlane.f32.xlu0 %v2018
  %v2020 = vpop.xlane.xlu0 %2019
  %v2021 = vadd.f32 %v1047, %v2020
  %v2022 = vmul.f32 %v2010, %v2010
  %v2023 = vmul.f32 %v2017, %v2017
  %v2024 = vadd.f32 %v2022, %v2023
  %2025 = vadd.xlane.f32.xlu0 %v2024
  %v2026 = vpop.xlane.xlu0 %2025
  %v2027 = vadd.f32 %v1053, %v2026
  %v2028 = vrcp.pop 512.0
  %v2029 = vmul.f32 %v2021, %v2028
  %v2030 = vmul.f32 %v2027, %v2028
  %v2031 = vmul.f32 %v2029, %v2029
  %v2032 = vsub.f32 %v2030, %v2031
  %v2033 = vmax.f32 %v2032, 0.0
  %v2034 = vld [vmem:[%s2] sm:$0xff]
  %v2035 = vadd.f32 %v2033, 1e-05
  %v2036 = vrsqrt.pop %v2035
  %v2037 = vmul.f32 %v2034, %v2036
  %v2038 = vld [vmem:[%s3] sm:$0xff]
  %v2039 = vmul.f32 %v2029, %v2037
  %v2040 = vsub.f32 %v2038, %v2039
  %2042 = vset.pattern.permute.xlu0 0
  %2043 = vperm.xlu0 %2042, %v2037
  %v2044 = vpop.permute.xlu0 %2043
  %v2046 = vmul.f32 %v1036, %v2044
  %v2047 = vmul.f32 %v1043, %v2044
  %2049 = vset.pattern.permute.xlu0 0
  %2050 = vperm.xlu0 %2049, %v2040
  %v2051 = vpop.permute.xlu0 %2050
  %v2053 = vadd.f32 %v2046, %v2051
  %v2054 = vadd.f32 %v2047, %v2051
  %vm2055 = vcmp.ge.f32.partialorder %v2053, 0.0
  %vm2056 = vcmp.ge.f32.partialorder %v2054, 0.0
  %v2057 = vmul.f32 %v2053, 0.1
  %v2058 = vmul.f32 %v2054, 0.1
  %v2059 = vsel %vm2055, %v2053, %v2057
  %v2060 = vsel %vm2056, %v2054, %v2058
  %2061 = vst [vmem:[%s4] sm:$0xff] %v2059
  %2062 = vst [vmem:[%s4 + $0x8] sm:$0xff] %v2060
  %v2063 = vmul.f32 %v2010, %v2044
  %v2064 = vmul.f32 %v2017, %v2044
  %v2065 = vadd.f32 %v2063, %v2051
  %v2066 = vadd.f32 %v2064, %v2051
  %vm2067 = vcmp.ge.f32.partialorder %v2065, 0.0
  %vm2068 = vcmp.ge.f32.partialorder %v2066, 0.0
  %v2069 = vmul.f32 %v2065, 0.1
  %v2070 = vmul.f32 %v2066, 0.1
  %v2071 = vsel %vm2067, %v2065, %v2069
  %v2072 = vsel %vm2068, %v2066, %v2070
  %s2073 = scalar_lea.vmem %s4, 16
  %2074 = vst [vmem:[%s2073] sm:$0xff] %v2071
  %2075 = vst [vmem:[%s2073 + $0x8] sm:$0xff] %v2072
  // Predicated region
  $region18: #{cnn_block_forward.1} parent=0 // pred_check
    _
  $region19: #{cnn_block_forward.1} parent=0 // pred_check_branch
    %2077 = sbr.rel (0) target = $region21
  $region20: #{cnn_block_forward.1} parent=0 // pred_region
    _
  $region21: #{cnn_block_forward.1} parent=0 // pred_fallthru
    _
  // Predicated region
  $region22: #{cnn_block_forward.1} parent=0 // pred_check
    _
  $region23: #{cnn_block_forward.1} parent=0 // pred_check_branch
    %2079 = sbr.rel (0) target = $region25
  $region24: #{cnn_block_forward.1} parent=0 // pred_region
    _
  $region25: #{cnn_block_forward.1} parent=0 // pred_fallthru
    _

</llo_original>
